<compile_context>
chip_gen: v7x
topology: tpu7x:2x2x1
jax: 0.10.0
libtpu: 0.0.40
codegen_flags: <defaults>
</compile_context>

<pallas_src>
import functools

import jax
import jax.numpy as jnp
import numpy as np
from jax.experimental import pallas as pl
from jax.experimental.pallas import tpu as pltpu


def _mbconv_kernel(x_ref, w_pw_ref, sh1_ref, w_dw_ref, sh2_ref,
                   w_pwl_ref, sh3_ref, o_ref, *, has_skip: bool):
    _, H, W, Cin = x_ref.shape
    Cmid = w_pw_ref.shape[1]
    Cout = w_pwl_ref.shape[1]

    x = x_ref[0]                                           # (H, W, Cin)

    # ---- conv_pw 1x1 (MXU) + folded BN1 + ReLU -----------------------------
    h = jnp.dot(x.reshape(H * W, Cin), w_pw_ref[...],
                preferred_element_type=jnp.float32)        # default precision
    h = jnp.maximum(h + sh1_ref[...], 0.0).reshape(H, W, Cmid)

    # ---- conv_dw 3x3 depthwise, stride 1, pad 1 + folded BN2 + ReLU --------
    wdw = w_dw_ref[...]                                    # (9, Cmid), row = kh*3+kw
    col = jax.lax.broadcasted_iota(jnp.int32, (H, W, Cmid), 1)

    # W-shifted copies: roll on the XLU + border-zero select on the VPU.
    h_l = jnp.where(col == 0, 0.0, pltpu.roll(h, shift=1, axis=1))          # h[y, x-1]
    h_r = jnp.where(col == W - 1, 0.0, pltpu.roll(h, shift=W - 1, axis=1))  # h[y, x+1]

    zrow = jnp.zeros((1, W, Cmid), jnp.float32)

    def up(a):     # row y -> a[y-1], zero at y == 0
        return jnp.concatenate([zrow, a[:H - 1]], axis=0)

    def dn(a):     # row y -> a[y+1], zero at y == H-1
        return jnp.concatenate([a[1:], zrow], axis=0)

    def tap(a, kh, kw):
        return a * wdw[kh * 3 + kw][None, None, :]

    # Initialize with the center tap + folded bias/BN2 shift (no zeros pass).
    acc = tap(h, 1, 1) + sh2_ref[...].reshape(1, 1, Cmid)
    acc = acc + tap(h_l, 1, 0) + tap(h_r, 1, 2)
    acc = acc + tap(up(h), 0, 1) + tap(up(h_l), 0, 0) + tap(up(h_r), 0, 2)
    acc = acc + tap(dn(h), 2, 1) + tap(dn(h_l), 2, 0) + tap(dn(h_r), 2, 2)
    acc = jnp.maximum(acc, 0.0)

    # se_layer=None -> nn.Identity()

    # ---- conv_pwl 1x1 (MXU) + folded BN3 -----------------------------------
    y = jnp.dot(acc.reshape(H * W, Cmid), w_pwl_ref[...],
                preferred_element_type=jnp.float32)
    y = (y + sh3_ref[...]).reshape(H, W, Cout)

    if has_skip:                                           # drop_path(0.0) -> Identity
        y = y + x

    o_ref[0] = y


def _fold_params(p, eps=1e-5):
    """Fold BN running stats + conv biases into weights / per-stage shifts."""
    def fold(g, b, m, v):
        s = g / jnp.sqrt(v + eps)
        return s, b - m * s

    s1, t1 = fold(p["bn1_g"], p["bn1_b"], p["bn1_m"], p["bn1_v"])
    s2, t2 = fold(p["bn2_g"], p["bn2_b"], p["bn2_m"], p["bn2_v"])
    s3, t3 = fold(p["bn3_g"], p["bn3_b"], p["bn3_m"], p["bn3_v"])

    cmid = p["w_pw"].shape[1]
    w_pw = (p["w_pw"] * s1[None, :]).astype(jnp.float32)
    sh1 = (s1 * p["b_pw"] + t1).reshape(1, -1).astype(jnp.float32)
    w_dw = (p["w_dw"] * s2[None, None, :]).reshape(9, cmid).astype(jnp.float32)
    sh2 = (s2 * p["b_dw"] + t2).reshape(1, -1).astype(jnp.float32)
    w_pwl = (p["w_pwl"] * s3[None, :]).astype(jnp.float32)
    sh3 = (s3 * p["b_pwl"] + t3).reshape(1, -1).astype(jnp.float32)
    return w_pw, sh1, w_dw, sh2, w_pwl, sh3


def inverted_residual_pallas_nhwc(x_nhwc, p, *, has_skip):
    """x_nhwc: (B, H, W, Cin) float32. Returns (B, H, W, Cout)."""
    B, H, W, Cin = x_nhwc.shape
    w_pw, sh1, w_dw, sh2, w_pwl, sh3 = _fold_params(p)
    Cmid = w_pw.shape[1]
    Cout = w_pwl.shape[1]
    if has_skip:
        assert Cin == Cout, "skip connection requires in_chs == out_chs"

    kernel = functools.partial(_mbconv_kernel, has_skip=has_skip)

    return pl.pallas_call(
        kernel,
        out_shape=jax.ShapeDtypeStruct((B, H, W, Cout), jnp.float32),
        grid=(B,),
        in_specs=[
            pl.BlockSpec((1, H, W, Cin), lambda b: (b, 0, 0, 0)),   # x (per-image)
            pl.BlockSpec((Cin, Cmid), lambda b: (0, 0)),            # w_pw  (folded)
            pl.BlockSpec((1, Cmid), lambda b: (0, 0)),              # shift1
            pl.BlockSpec((9, Cmid), lambda b: (0, 0)),              # w_dw  (folded)
            pl.BlockSpec((1, Cmid), lambda b: (0, 0)),              # shift2
            pl.BlockSpec((Cmid, Cout), lambda b: (0, 0)),           # w_pwl (folded)
            pl.BlockSpec((1, Cout), lambda b: (0, 0)),              # shift3
        ],
        out_specs=pl.BlockSpec((1, H, W, Cout), lambda b: (b, 0, 0, 0)),
        compiler_params=pltpu.CompilerParams(
            dimension_semantics=("parallel",),
            vmem_limit_bytes=48 * 1024 * 1024),
    )(x_nhwc.astype(jnp.float32), w_pw, sh1, w_dw, sh2, w_pwl, sh3)


# ----------------------------- pure-JAX reference -----------------------------
def inverted_residual_reference(x_nchw, p, *, has_skip, eps=1e-5):
    prec = jax.lax.Precision.HIGHEST
    dn = ("NCHW", "OIHW", "NCHW")

    def bn(x, g, b, m, v):
        return (g[None, :, None, None] * (x - m[None, :, None, None])
                / jnp.sqrt(v[None, :, None, None] + eps) + b[None, :, None, None])

    w = jnp.transpose(p["w_pw"], (1, 0))[:, :, None, None]        # (Cmid,Cin,1,1)
    x1 = jax.lax.conv_general_dilated(x_nchw, w, (1, 1), "VALID",
                                      dimension_numbers=dn, precision=prec)
    x1 = x1 + p["b_pw"][None, :, None, None]
    x1 = jnp.maximum(bn(x1, p["bn1_g"], p["bn1_b"], p["bn1_m"], p["bn1_v"]), 0.0)

    Cmid = x1.shape[1]
    wdw = jnp.transpose(p["w_dw"], (2, 0, 1))[:, None, :, :]      # (Cmid,1,3,3)
    x2 = jax.lax.conv_general_dilated(x1, wdw, (1, 1), ((1, 1), (1, 1)),
                                      dimension_numbers=dn,
                                      feature_group_count=Cmid, precision=prec)
    x2 = x2 + p["b_dw"][None, :, None, None]
    x2 = jnp.maximum(bn(x2, p["bn2_g"], p["bn2_b"], p["bn2_m"], p["bn2_v"]), 0.0)

    wl = jnp.transpose(p["w_pwl"], (1, 0))[:, :, None, None]      # (Cout,Cmid,1,1)
    x3 = jax.lax.conv_general_dilated(x2, wl, (1, 1), "VALID",
                                      dimension_numbers=dn, precision=prec)
    x3 = x3 + p["b_pwl"][None, :, None, None]
    x3 = bn(x3, p["bn3_g"], p["bn3_b"], p["bn3_m"], p["bn3_v"])
    if has_skip:
        x3 = x3 + x_nchw
    return x3


# --------------------------------- params -------------------------------------
def make_params(key, in_chs, out_chs, exp_ratio):
    mid_chs = int(in_chs * exp_ratio)
    ks = jax.random.split(key, 16)
    n = lambda k, shape, s=0.1: s * jax.random.normal(k, shape, jnp.float32)
    p = {
        "w_pw":  n(ks[0], (in_chs, mid_chs)),
        "b_pw":  n(ks[1], (mid_chs,), 0.05),
        "w_dw":  n(ks[2], (3, 3, mid_chs)),
        "b_dw":  n(ks[3], (mid_chs,), 0.05),
        "w_pwl": n(ks[4], (mid_chs, out_chs)),
        "b_pwl": n(ks[5], (out_chs,), 0.05),
        "bn1_g": 1.0 + n(ks[6], (mid_chs,)),
        "bn1_b": n(ks[7], (mid_chs,)),
        "bn1_m": n(ks[8], (mid_chs,)),
        "bn1_v": 0.8 + 0.2 * jax.random.uniform(ks[9], (mid_chs,), jnp.float32),
        "bn2_g": 1.0 + n(ks[10], (mid_chs,)),
        "bn2_b": n(ks[11], (mid_chs,)),
        "bn2_m": n(ks[12], (mid_chs,)),
        "bn2_v": 0.8 + 0.2 * jax.random.uniform(ks[13], (mid_chs,), jnp.float32),
        "bn3_g": 1.0 + n(ks[14], (out_chs,)),
        "bn3_b": n(ks[15], (out_chs,)),
        "bn3_m": jnp.zeros((out_chs,), jnp.float32),
        "bn3_v": jnp.ones((out_chs,), jnp.float32),
    }
    return p


if __name__ == "__main__":
    key = jax.random.PRNGKey(0)
    k_x, k_p = jax.random.split(key)

    in_chs, out_chs, exp_ratio = 4, 4, 4.0      # mid_chs = 16
    B, H, W = 2, 16, 16
    stride = 1
    has_skip = (in_chs == out_chs) and (stride == 1)   # and not noskip

    x_nchw = jax.random.normal(k_x, (B, in_chs, H, W), jnp.float32)  # PyTorch layout
    params = make_params(k_p, in_chs, out_chs, exp_ratio)

    # The kernel / production wrapper are NHWC-native; the NCHW<->NHWC conversion
    # below is test-harness only (a real network would stay in NHWC end-to-end).
    x_nhwc = jnp.transpose(x_nchw, (0, 2, 3, 1))

    out_nhwc = jax.block_until_ready(
        inverted_residual_pallas_nhwc(x_nhwc, params, has_skip=has_skip))

    ref_nchw = jax.block_until_ready(
        inverted_residual_reference(x_nchw, params, has_skip=has_skip))
    ref_nhwc = jnp.transpose(ref_nchw, (0, 2, 3, 1))

    # MXU matmuls now run at default precision (bf16 passes) -> relaxed tolerance
    # against the f32 HIGHEST-precision reference.
    np.testing.assert_allclose(np.asarray(out_nhwc), np.asarray(ref_nhwc),
                               rtol=1e-2, atol=1e-2)
    print("KERNEL_OK")
</pallas_src>

<mosaic_0001>
module attributes {stable_mosaic.version = 11 : i64} {
  func.func @_mbconv_kernel(%arg0: i32, %arg1: memref<1x16x16x4xf32, #tpu.memory_space<vmem>>, %arg2: memref<4x16xf32, #tpu.memory_space<vmem>>, %arg3: memref<1x16xf32, #tpu.memory_space<vmem>>, %arg4: memref<9x16xf32, #tpu.memory_space<vmem>>, %arg5: memref<1x16xf32, #tpu.memory_space<vmem>>, %arg6: memref<16x4xf32, #tpu.memory_space<vmem>>, %arg7: memref<1x4xf32, #tpu.memory_space<vmem>>, %arg8: memref<1x16x16x4xf32, #tpu.memory_space<vmem>>) attributes {dimension_semantics = [#tpu.dimension_semantics<parallel>], iteration_bounds = array<i64: 2>, scalar_prefetch = 0 : i64, scratch_operands = 0 : i64, tpu.core_type = #tpu.core_type<tc>, window_params = [{transform_indices = @transform_0, window_bounds = array<i64: 1, 16, 16, 4>}, {pipeline_mode = #tpu.pipeline_mode<synchronous>, transform_indices = @transform_1, window_bounds = array<i64: 4, 16>}, {pipeline_mode = #tpu.pipeline_mode<synchronous>, transform_indices = @transform_2, window_bounds = array<i64: 1, 16>}, {pipeline_mode = #tpu.pipeline_mode<synchronous>, transform_indices = @transform_3, window_bounds = array<i64: 9, 16>}, {pipeline_mode = #tpu.pipeline_mode<synchronous>, transform_indices = @transform_4, window_bounds = array<i64: 1, 16>}, {pipeline_mode = #tpu.pipeline_mode<synchronous>, transform_indices = @transform_5, window_bounds = array<i64: 16, 4>}, {pipeline_mode = #tpu.pipeline_mode<synchronous>, transform_indices = @transform_6, window_bounds = array<i64: 1, 4>}, {transform_indices = @transform_7, window_bounds = array<i64: 1, 16, 16, 4>}]} {
    %c0 = arith.constant 0 : index
    %c0_0 = arith.constant 0 : index
    %c0_1 = arith.constant 0 : index
    %c0_2 = arith.constant 0 : index
    %0 = vector.load %arg1[%c0, %c0_0, %c0_1, %c0_2] : memref<1x16x16x4xf32, #tpu.memory_space<vmem>>, vector<1x16x16x4xf32>
    %1 = vector.shape_cast %0 : vector<1x16x16x4xf32> to vector<16x16x4xf32>
    %2 = vector.shape_cast %1 : vector<16x16x4xf32> to vector<256x4xf32>
    %c0_3 = arith.constant 0 : index
    %c0_4 = arith.constant 0 : index
    %3 = vector.load %arg2[%c0_3, %c0_4] : memref<4x16xf32, #tpu.memory_space<vmem>>, vector<4x16xf32>
    %cst = arith.constant dense<0.000000e+00> : vector<256x16xf32>
    %4 = tpu.matmul %2, %3, %cst {dimension_numbers = #tpu.dot_dimension_numbers<[1], [0], [0], [1], [0, 0, 1, 1], [], []>} : vector<256x4xf32>, vector<4x16xf32>, vector<256x16xf32> -> vector<256x16xf32>
    %c0_5 = arith.constant 0 : index
    %c0_6 = arith.constant 0 : index
    %5 = vector.load %arg3[%c0_5, %c0_6] : memref<1x16xf32, #tpu.memory_space<vmem>>, vector<1x16xf32>
    %6 = vector.broadcast %5 : vector<1x16xf32> to vector<256x16xf32>
    %7 = arith.addf %4, %6 : vector<256x16xf32>
    %cst_7 = arith.constant 0.000000e+00 : f32
    %8 = vector.broadcast %cst_7 : f32 to vector<256x16xf32>
    %9 = arith.maximumf %7, %8 : vector<256x16xf32>
    %10 = vector.shape_cast %9 : vector<256x16xf32> to vector<16x16x16xf32>
    %c0_8 = arith.constant 0 : index
    %c0_9 = arith.constant 0 : index
    %11 = vector.load %arg4[%c0_8, %c0_9] : memref<9x16xf32, #tpu.memory_space<vmem>>, vector<9x16xf32>
    %12 = tpu.iota {dimensions = array<i32: 1>} : vector<16x16x16xi32>
    %c0_i32 = arith.constant 0 : i32
    %13 = vector.broadcast %c0_i32 : i32 to vector<16x16x16xi32>
    %14 = arith.cmpi eq, %12, %13 : vector<16x16x16xi32>
    %c1_i32 = arith.constant 1 : i32
    %15 = tpu.dynamic_rotate %10 by %c1_i32 dim 1 : vector<16x16x16xf32>, i32 -> vector<16x16x16xf32>
    %cst_10 = arith.constant 0.000000e+00 : f32
    %16 = vector.broadcast %cst_10 : f32 to vector<16x16x16xf32>
    %17 = arith.select %14, %16, %15 : vector<16x16x16xi1>, vector<16x16x16xf32>
    %c15_i32 = arith.constant 15 : i32
    %18 = vector.broadcast %c15_i32 : i32 to vector<16x16x16xi32>
    %19 = arith.cmpi eq, %12, %18 : vector<16x16x16xi32>
    %c15_i32_11 = arith.constant 15 : i32
    %20 = tpu.dynamic_rotate %10 by %c15_i32_11 dim 1 : vector<16x16x16xf32>, i32 -> vector<16x16x16xf32>
    %cst_12 = arith.constant 0.000000e+00 : f32
    %21 = vector.broadcast %cst_12 : f32 to vector<16x16x16xf32>
    %22 = arith.select %19, %21, %20 : vector<16x16x16xi1>, vector<16x16x16xf32>
    %cst_13 = arith.constant 0.000000e+00 : f32
    %23 = vector.broadcast %cst_13 : f32 to vector<1x16x16xf32>
    %24 = vector.extract_strided_slice %11 {offsets = [4, 0], sizes = [1, 16], strides = [1, 1]} : vector<9x16xf32> to vector<1x16xf32>
    %25 = vector.shape_cast %24 : vector<1x16xf32> to vector<16xf32>
    %26 = vector.shape_cast %25 : vector<16xf32> to vector<1x1x16xf32>
    %27 = vector.broadcast %26 : vector<1x1x16xf32> to vector<16x16x16xf32>
    %28 = arith.mulf %10, %27 : vector<16x16x16xf32>
    %c0_14 = arith.constant 0 : index
    %c0_15 = arith.constant 0 : index
    %29 = vector.load %arg5[%c0_14, %c0_15] : memref<1x16xf32, #tpu.memory_space<vmem>>, vector<1x16xf32>
    %30 = vector.shape_cast %29 : vector<1x16xf32> to vector<1x1x16xf32>
    %31 = vector.broadcast %30 : vector<1x1x16xf32> to vector<16x16x16xf32>
    %32 = arith.addf %28, %31 : vector<16x16x16xf32>
    %33 = vector.extract_strided_slice %11 {offsets = [3, 0], sizes = [1, 16], strides = [1, 1]} : vector<9x16xf32> to vector<1x16xf32>
    %34 = vector.shape_cast %33 : vector<1x16xf32> to vector<16xf32>
    %35 = vector.shape_cast %34 : vector<16xf32> to vector<1x1x16xf32>
    %36 = vector.broadcast %35 : vector<1x1x16xf32> to vector<16x16x16xf32>
    %37 = arith.mulf %17, %36 : vector<16x16x16xf32>
    %38 = arith.addf %32, %37 : vector<16x16x16xf32>
    %39 = vector.extract_strided_slice %11 {offsets = [5, 0], sizes = [1, 16], strides = [1, 1]} : vector<9x16xf32> to vector<1x16xf32>
    %40 = vector.shape_cast %39 : vector<1x16xf32> to vector<16xf32>
    %41 = vector.shape_cast %40 : vector<16xf32> to vector<1x1x16xf32>
    %42 = vector.broadcast %41 : vector<1x1x16xf32> to vector<16x16x16xf32>
    %43 = arith.mulf %22, %42 : vector<16x16x16xf32>
    %44 = arith.addf %38, %43 : vector<16x16x16xf32>
    %45 = vector.extract_strided_slice %10 {offsets = [0, 0, 0], sizes = [15, 16, 16], strides = [1, 1, 1]} : vector<16x16x16xf32> to vector<15x16x16xf32>
    %46 = tpu.concatenate %23, %45 in 0 : vector<1x16x16xf32>, vector<15x16x16xf32> -> vector<16x16x16xf32>
    %47 = vector.extract_strided_slice %11 {offsets = [1, 0], sizes = [1, 16], strides = [1, 1]} : vector<9x16xf32> to vector<1x16xf32>
    %48 = vector.shape_cast %47 : vector<1x16xf32> to vector<16xf32>
    %49 = vector.shape_cast %48 : vector<16xf32> to vector<1x1x16xf32>
    %50 = vector.broadcast %49 : vector<1x1x16xf32> to vector<16x16x16xf32>
    %51 = arith.mulf %46, %50 : vector<16x16x16xf32>
    %52 = arith.addf %44, %51 : vector<16x16x16xf32>
    %53 = vector.extract_strided_slice %17 {offsets = [0, 0, 0], sizes = [15, 16, 16], strides = [1, 1, 1]} : vector<16x16x16xf32> to vector<15x16x16xf32>
    %54 = tpu.concatenate %23, %53 in 0 : vector<1x16x16xf32>, vector<15x16x16xf32> -> vector<16x16x16xf32>
    %55 = vector.extract_strided_slice %11 {offsets = [0, 0], sizes = [1, 16], strides = [1, 1]} : vector<9x16xf32> to vector<1x16xf32>
    %56 = vector.shape_cast %55 : vector<1x16xf32> to vector<16xf32>
    %57 = vector.shape_cast %56 : vector<16xf32> to vector<1x1x16xf32>
    %58 = vector.broadcast %57 : vector<1x1x16xf32> to vector<16x16x16xf32>
    %59 = arith.mulf %54, %58 : vector<16x16x16xf32>
    %60 = arith.addf %52, %59 : vector<16x16x16xf32>
    %61 = vector.extract_strided_slice %22 {offsets = [0, 0, 0], sizes = [15, 16, 16], strides = [1, 1, 1]} : vector<16x16x16xf32> to vector<15x16x16xf32>
    %62 = tpu.concatenate %23, %61 in 0 : vector<1x16x16xf32>, vector<15x16x16xf32> -> vector<16x16x16xf32>
    %63 = vector.extract_strided_slice %11 {offsets = [2, 0], sizes = [1, 16], strides = [1, 1]} : vector<9x16xf32> to vector<1x16xf32>
    %64 = vector.shape_cast %63 : vector<1x16xf32> to vector<16xf32>
    %65 = vector.shape_cast %64 : vector<16xf32> to vector<1x1x16xf32>
    %66 = vector.broadcast %65 : vector<1x1x16xf32> to vector<16x16x16xf32>
    %67 = arith.mulf %62, %66 : vector<16x16x16xf32>
    %68 = arith.addf %60, %67 : vector<16x16x16xf32>
    %69 = vector.extract_strided_slice %10 {offsets = [1, 0, 0], sizes = [15, 16, 16], strides = [1, 1, 1]} : vector<16x16x16xf32> to vector<15x16x16xf32>
    %70 = tpu.concatenate %69, %23 in 0 : vector<15x16x16xf32>, vector<1x16x16xf32> -> vector<16x16x16xf32>
    %71 = vector.extract_strided_slice %11 {offsets = [7, 0], sizes = [1, 16], strides = [1, 1]} : vector<9x16xf32> to vector<1x16xf32>
    %72 = vector.shape_cast %71 : vector<1x16xf32> to vector<16xf32>
    %73 = vector.shape_cast %72 : vector<16xf32> to vector<1x1x16xf32>
    %74 = vector.broadcast %73 : vector<1x1x16xf32> to vector<16x16x16xf32>
    %75 = arith.mulf %70, %74 : vector<16x16x16xf32>
    %76 = arith.addf %68, %75 : vector<16x16x16xf32>
    %77 = vector.extract_strided_slice %17 {offsets = [1, 0, 0], sizes = [15, 16, 16], strides = [1, 1, 1]} : vector<16x16x16xf32> to vector<15x16x16xf32>
    %78 = tpu.concatenate %77, %23 in 0 : vector<15x16x16xf32>, vector<1x16x16xf32> -> vector<16x16x16xf32>
    %79 = vector.extract_strided_slice %11 {offsets = [6, 0], sizes = [1, 16], strides = [1, 1]} : vector<9x16xf32> to vector<1x16xf32>
    %80 = vector.shape_cast %79 : vector<1x16xf32> to vector<16xf32>
    %81 = vector.shape_cast %80 : vector<16xf32> to vector<1x1x16xf32>
    %82 = vector.broadcast %81 : vector<1x1x16xf32> to vector<16x16x16xf32>
    %83 = arith.mulf %78, %82 : vector<16x16x16xf32>
    %84 = arith.addf %76, %83 : vector<16x16x16xf32>
    %85 = vector.extract_strided_slice %22 {offsets = [1, 0, 0], sizes = [15, 16, 16], strides = [1, 1, 1]} : vector<16x16x16xf32> to vector<15x16x16xf32>
    %86 = tpu.concatenate %85, %23 in 0 : vector<15x16x16xf32>, vector<1x16x16xf32> -> vector<16x16x16xf32>
    %87 = vector.extract_strided_slice %11 {offsets = [8, 0], sizes = [1, 16], strides = [1, 1]} : vector<9x16xf32> to vector<1x16xf32>
    %88 = vector.shape_cast %87 : vector<1x16xf32> to vector<16xf32>
    %89 = vector.shape_cast %88 : vector<16xf32> to vector<1x1x16xf32>
    %90 = vector.broadcast %89 : vector<1x1x16xf32> to vector<16x16x16xf32>
    %91 = arith.mulf %86, %90 : vector<16x16x16xf32>
    %92 = arith.addf %84, %91 : vector<16x16x16xf32>
    %cst_16 = arith.constant 0.000000e+00 : f32
    %93 = vector.broadcast %cst_16 : f32 to vector<16x16x16xf32>
    %94 = arith.maximumf %92, %93 : vector<16x16x16xf32>
    %95 = vector.shape_cast %94 : vector<16x16x16xf32> to vector<256x16xf32>
    %c0_17 = arith.constant 0 : index
    %c0_18 = arith.constant 0 : index
    %96 = vector.load %arg6[%c0_17, %c0_18] : memref<16x4xf32, #tpu.memory_space<vmem>>, vector<16x4xf32>
    %cst_19 = arith.constant dense<0.000000e+00> : vector<256x4xf32>
    %97 = tpu.matmul %95, %96, %cst_19 {dimension_numbers = #tpu.dot_dimension_numbers<[1], [0], [0], [1], [0, 0, 1, 1], [], []>} : vector<256x16xf32>, vector<16x4xf32>, vector<256x4xf32> -> vector<256x4xf32>
    %c0_20 = arith.constant 0 : index
    %c0_21 = arith.constant 0 : index
    %98 = vector.load %arg7[%c0_20, %c0_21] : memref<1x4xf32, #tpu.memory_space<vmem>>, vector<1x4xf32>
    %99 = vector.broadcast %98 : vector<1x4xf32> to vector<256x4xf32>
    %100 = arith.addf %97, %99 : vector<256x4xf32>
    %101 = vector.shape_cast %100 : vector<256x4xf32> to vector<16x16x4xf32>
    %102 = arith.addf %101, %1 : vector<16x16x4xf32>
    %c0_22 = arith.constant 0 : index
    %c0_23 = arith.constant 0 : index
    %c0_24 = arith.constant 0 : index
    %c0_25 = arith.constant 0 : index
    %103 = vector.load %arg8[%c0_22, %c0_23, %c0_24, %c0_25] : memref<1x16x16x4xf32, #tpu.memory_space<vmem>>, vector<1x16x16x4xf32>
    %104 = vector.shape_cast %103 : vector<1x16x16x4xf32> to vector<16x16x4xf32>
    %105 = vector.shape_cast %102 : vector<16x16x4xf32> to vector<1x16x16x4xf32>
    tpu.vector_store %arg8[%c0_22, %c0_23, %c0_24, %c0_25], %105 {strides = array<i32>} : memref<1x16x16x4xf32, #tpu.memory_space<vmem>>, vector<1x16x16x4xf32>,
    return
  }
  func.func @transform_0(%arg0: i32) -> (i32, i32, i32, i32) {
    %c0_i32 = arith.constant 0 : i32
    %c0_i32_0 = arith.constant 0 : i32
    %c0_i32_1 = arith.constant 0 : i32
    %c0_i32_2 = arith.constant 0 : i32
    return %arg0, %c0_i32, %c0_i32_0, %c0_i32_1 : i32, i32, i32, i32
  }
  func.func @transform_1(%arg0: i32) -> (i32, i32) {
    %c0_i32 = arith.constant 0 : i32
    %c0_i32_0 = arith.constant 0 : i32
    %c0_i32_1 = arith.constant 0 : i32
    return %c0_i32, %c0_i32_0 : i32, i32
  }
  func.func @transform_2(%arg0: i32) -> (i32, i32) {
    %c0_i32 = arith.constant 0 : i32
    %c0_i32_0 = arith.constant 0 : i32
    %c0_i32_1 = arith.constant 0 : i32
    return %c0_i32, %c0_i32_0 : i32, i32
  }
  func.func @transform_3(%arg0: i32) -> (i32, i32) {
    %c0_i32 = arith.constant 0 : i32
    %c0_i32_0 = arith.constant 0 : i32
    %c0_i32_1 = arith.constant 0 : i32
    return %c0_i32, %c0_i32_0 : i32, i32
  }
  func.func @transform_4(%arg0: i32) -> (i32, i32) {
    %c0_i32 = arith.constant 0 : i32
    %c0_i32_0 = arith.constant 0 : i32
    %c0_i32_1 = arith.constant 0 : i32
    return %c0_i32, %c0_i32_0 : i32, i32
  }
  func.func @transform_5(%arg0: i32) -> (i32, i32) {
    %c0_i32 = arith.constant 0 : i32
    %c0_i32_0 = arith.constant 0 : i32
    %c0_i32_1 = arith.constant 0 : i32
    return %c0_i32, %c0_i32_0 : i32, i32
  }
  func.func @transform_6(%arg0: i32) -> (i32, i32) {
    %c0_i32 = arith.constant 0 : i32
    %c0_i32_0 = arith.constant 0 : i32
    %c0_i32_1 = arith.constant 0 : i32
    return %c0_i32, %c0_i32_0 : i32, i32
  }
  func.func @transform_7(%arg0: i32) -> (i32, i32, i32, i32) {
    %c0_i32 = arith.constant 0 : i32
    %c0_i32_0 = arith.constant 0 : i32
    %c0_i32_1 = arith.constant 0 : i32
    %c0_i32_2 = arith.constant 0 : i32
    return %arg0, %c0_i32, %c0_i32_0, %c0_i32_1 : i32, i32, i32, i32
  }
}

</mosaic_0001>

<llo_original>
// kernel: tpu_custom_call.1
$region0: #{tpu_custom_call.1}
  #allocation0 [shape = 'u32[]', space=smem, size = 0x4, offset = 0x4, fixed_abs, tag = 'smem constant byte address 0x4 - core index']
  #allocation1 [shape = 'u32[144,128]{1,0:T(1,128)}', space=vmem, size = 0x12000, scoped, tag = 'internal scratch']
  %s0 = inlined_call_operand.vmem [shape: f32[2,16,16,4], index: 0, kind: input, shape index: {}]
  %s1 = inlined_call_operand.vmem [shape: f32[4,16], index: 1, kind: input, shape index: {}]
  %s2 = inlined_call_operand.vmem [shape: f32[1,16], index: 2, kind: input, shape index: {}]
  %s3 = inlined_call_operand.vmem [shape: f32[9,16], index: 3, kind: input, shape index: {}]
  %s4 = inlined_call_operand.vmem [shape: f32[1,16], index: 4, kind: input, shape index: {}]
  %s5 = inlined_call_operand.vmem [shape: f32[16,4], index: 5, kind: input, shape index: {}]
  %s6 = inlined_call_operand.vmem [shape: f32[1,4], index: 6, kind: input, shape index: {}]
  %s7 = inlined_call_operand.vmem [shape: f32[2,16,16,4], index: 7, kind: output, shape index: {}]
  %s8 = sld [smem:[#allocation0]]
  $region61: #{tpu_custom_call.1} parent=0
    _
  %s10 = ssub.s32 1, %s8
  %s11 = scalar_select 0, %s10, %s8
  loop: start=0, step=1, limit=4
  $region2: #{tpu_custom_call.1} parent=0 // loop_pre_header
    _
  $region3: #{tpu_custom_call.1} parent=0 // loop_header
    %s13 = sphi 0, %s17
    %p14 = scmp.ge.s32.totalorder %s13, 4
    %s23 = sphi 0, %s25
    %s26 = sphi 0, %s23
    %s27 = sphi 0, %s26
    %s43 = sphi 0, %s27
    %s47 = sphi 0, %s47
    %s49 = sphi 0, %s47
    %s50 = sphi 0, %s49
    %s64 = sphi 0, %s50
    %s68 = sphi 0, %s68
    %s70 = sphi 0, %s68
    %s71 = sphi 0, %s70
    %s85 = sphi 0, %s71
    %s89 = sphi 0, %s89
    %s91 = sphi 0, %s89
    %s92 = sphi 0, %s91
    %s106 = sphi 0, %s92
    %s110 = sphi 0, %s110
    %s112 = sphi 0, %s110
    %s113 = sphi 0, %s112
    %s127 = sphi 0, %s113
    %s131 = sphi 0, %s131
    %s133 = sphi 0, %s131
    %s134 = sphi 0, %s133
    %s148 = sphi 0, %s134
    %s152 = sphi 0, %s152
    %s154 = sphi 0, %s152
    %s155 = sphi 0, %s154
    %s169 = sphi 0, %s155
    %s175 = sphi 0, %s177
    %s178 = sphi 0, %s175
    %s179 = sphi 0, %s178
    %s195 = sphi 0, %s179
  $region4: #{tpu_custom_call.1} parent=0 // loop_header_branch
    %16 = sbr.rel (%p14) target = $region8
  $region5: #{tpu_custom_call.1} parent=0 // loop_body
    %s18 = ssub.s32 %s13, 1
    %s19 = ssub.s32 %s13, 2
    %s20 = sadd.s32 %s13, 1
    %s21 = ssub.s32 %s13, %s20
    %p22 = scmp.eq.s32.totalorder %s21, 0
    %s24 = sadd.s32 %s23, 1
    %s25 = scalar_select %p22, %s23, %s24
    %p28 = pneg %p22
    %p29 = scmp.eq.s32.totalorder %s13, 1
    %p30 = por %p28, %p29
    %p31 = scmp.ne.s32.totalorder %s23, %s26
    %p32 = scmp.eq.s32.totalorder %s13, 0
    %p33 = por %p31, %p32
    %p34 = scmp.ne.s32.totalorder %s23, %s26
    %p35 = scmp.eq.s32.totalorder %s18, 1
    %p36 = por %p34, %p35
    %p37 = scmp.ne.s32.totalorder %s26, %s27
    %p38 = scmp.eq.s32.totalorder %s18, 0
    %p39 = por %p37, %p38
    %p40 = scmp.ne.s32.totalorder %s26, %s27
    %p41 = scmp.eq.s32.totalorder %s19, 1
    %p42 = por %p40, %p41
    %p44 = scmp.ne.s32.totalorder %s27, %s43
    %p45 = scmp.eq.s32.totalorder %s19, 0
    %p46 = por %p44, %p45
    %s48 = sadd.s32 %s47, 1
    %p51 = scmp.eq.s32.totalorder %s13, 1
    %p52 = scmp.ne.s32.totalorder %s47, %s49
    %p53 = scmp.eq.s32.totalorder %s13, 0
    %p54 = por %p52, %p53
    %p55 = scmp.ne.s32.totalorder %s47, %s49
    %p56 = scmp.eq.s32.totalorder %s18, 1
    %p57 = por %p55, %p56
    %p58 = scmp.ne.s32.totalorder %s49, %s50
    %p59 = scmp.eq.s32.totalorder %s18, 0
    %p60 = por %p58, %p59
    %p61 = scmp.ne.s32.totalorder %s49, %s50
    %p62 = scmp.eq.s32.totalorder %s19, 1
    %p63 = por %p61, %p62
    %p65 = scmp.ne.s32.totalorder %s50, %s64
    %p66 = scmp.eq.s32.totalorder %s19, 0
    %p67 = por %p65, %p66
    %s69 = sadd.s32 %s68, 1
    %p72 = scmp.eq.s32.totalorder %s13, 1
    %p73 = scmp.ne.s32.totalorder %s68, %s70
    %p74 = scmp.eq.s32.totalorder %s13, 0
    %p75 = por %p73, %p74
    %p76 = scmp.ne.s32.totalorder %s68, %s70
    %p77 = scmp.eq.s32.totalorder %s18, 1
    %p78 = por %p76, %p77
    %p79 = scmp.ne.s32.totalorder %s70, %s71
    %p80 = scmp.eq.s32.totalorder %s18, 0
    %p81 = por %p79, %p80
    %p82 = scmp.ne.s32.totalorder %s70, %s71
    %p83 = scmp.eq.s32.totalorder %s19, 1
    %p84 = por %p82, %p83
    %p86 = scmp.ne.s32.totalorder %s71, %s85
    %p87 = scmp.eq.s32.totalorder %s19, 0
    %p88 = por %p86, %p87
    %s90 = sadd.s32 %s89, 1
    %p93 = scmp.eq.s32.totalorder %s13, 1
    %p94 = scmp.ne.s32.totalorder %s89, %s91
    %p95 = scmp.eq.s32.totalorder %s13, 0
    %p96 = por %p94, %p95
    %p97 = scmp.ne.s32.totalorder %s89, %s91
    %p98 = scmp.eq.s32.totalorder %s18, 1
    %p99 = por %p97, %p98
    %p100 = scmp.ne.s32.totalorder %s91, %s92
    %p101 = scmp.eq.s32.totalorder %s18, 0
    %p102 = por %p100, %p101
    %p103 = scmp.ne.s32.totalorder %s91, %s92
    %p104 = scmp.eq.s32.totalorder %s19, 1
    %p105 = por %p103, %p104
    %p107 = scmp.ne.s32.totalorder %s92, %s106
    %p108 = scmp.eq.s32.totalorder %s19, 0
    %p109 = por %p107, %p108
    %s111 = sadd.s32 %s110, 1
    %p114 = scmp.eq.s32.totalorder %s13, 1
    %p115 = scmp.ne.s32.totalorder %s110, %s112
    %p116 = scmp.eq.s32.totalorder %s13, 0
    %p117 = por %p115, %p116
    %p118 = scmp.ne.s32.totalorder %s110, %s112
    %p119 = scmp.eq.s32.totalorder %s18, 1
    %p120 = por %p118, %p119
    %p121 = scmp.ne.s32.totalorder %s112, %s113
    %p122 = scmp.eq.s32.totalorder %s18, 0
    %p123 = por %p121, %p122
    %p124 = scmp.ne.s32.totalorder %s112, %s113
    %p125 = scmp.eq.s32.totalorder %s19, 1
    %p126 = por %p124, %p125
    %p128 = scmp.ne.s32.totalorder %s113, %s127
    %p129 = scmp.eq.s32.totalorder %s19, 0
    %p130 = por %p128, %p129
    %s132 = sadd.s32 %s131, 1
    %p135 = scmp.eq.s32.totalorder %s13, 1
    %p136 = scmp.ne.s32.totalorder %s131, %s133
    %p137 = scmp.eq.s32.totalorder %s13, 0
    %p138 = por %p136, %p137
    %p139 = scmp.ne.s32.totalorder %s131, %s133
    %p140 = scmp.eq.s32.totalorder %s18, 1
    %p141 = por %p139, %p140
    %p142 = scmp.ne.s32.totalorder %s133, %s134
    %p143 = scmp.eq.s32.totalorder %s18, 0
    %p144 = por %p142, %p143
    %p145 = scmp.ne.s32.totalorder %s133, %s134
    %p146 = scmp.eq.s32.totalorder %s19, 1
    %p147 = por %p145, %p146
    %p149 = scmp.ne.s32.totalorder %s134, %s148
    %p150 = scmp.eq.s32.totalorder %s19, 0
    %p151 = por %p149, %p150
    %s153 = sadd.s32 %s152, 1
    %p156 = scmp.eq.s32.totalorder %s13, 1
    %p157 = scmp.ne.s32.totalorder %s152, %s154
    %p158 = scmp.eq.s32.totalorder %s13, 0
    %p159 = por %p157, %p158
    %p160 = scmp.ne.s32.totalorder %s152, %s154
    %p161 = scmp.eq.s32.totalorder %s18, 1
    %p162 = por %p160, %p161
    %p163 = scmp.ne.s32.totalorder %s154, %s155
    %p164 = scmp.eq.s32.totalorder %s18, 0
    %p165 = por %p163, %p164
    %p166 = scmp.ne.s32.totalorder %s154, %s155
    %p167 = scmp.eq.s32.totalorder %s19, 1
    %p168 = por %p166, %p167
    %p170 = scmp.ne.s32.totalorder %s155, %s169
    %p171 = scmp.eq.s32.totalorder %s19, 0
    %p172 = por %p170, %p171
    %s173 = ssub.s32 %s13, %s20
    %p174 = scmp.eq.s32.totalorder %s173, 0
    %s176 = sadd.s32 %s175, 1
    %s177 = scalar_select %p174, %s175, %s176
    %p180 = pneg %p174
    %p181 = scmp.eq.s32.totalorder %s13, 1
    %p182 = por %p180, %p181
    %p183 = scmp.ne.s32.totalorder %s175, %s178
    %p184 = scmp.eq.s32.totalorder %s13, 0
    %p185 = por %p183, %p184
    %p186 = scmp.ne.s32.totalorder %s175, %s178
    %p187 = scmp.eq.s32.totalorder %s18, 1
    %p188 = por %p186, %p187
    %p189 = scmp.ne.s32.totalorder %s178, %s179
    %p190 = scmp.eq.s32.totalorder %s18, 0
    %p191 = por %p189, %p190
    %p192 = scmp.ne.s32.totalorder %s178, %s179
    %p193 = scmp.eq.s32.totalorder %s19, 1
    %p194 = por %p192, %p193
    %p196 = scmp.ne.s32.totalorder %s179, %s195
    %p197 = scmp.eq.s32.totalorder %s19, 0
    %p198 = por %p196, %p197
    %p199 = scmp.le.s32.totalorder 1, %s13
    %p200 = scmp.lt.s32.totalorder %s13, 3
    %p201 = pnand %p199, %p200
    %p202 = pneg %p201
    // Predicated region
    $region9: #{tpu_custom_call.1} parent=5 // pred_check
      _
    $region10: #{tpu_custom_call.1} parent=5 // pred_check_branch
      %204 = sbr.rel (%p201) target = $region12
    $region11: #{tpu_custom_call.1} parent=5 // pred_region
      %s205 = ssub.s32 %s13, 1
      // Predicated region
      $region13: #{tpu_custom_call.1} parent=11 // pred_check
        %p206 = pneg %p60
      $region14: #{tpu_custom_call.1} parent=11 // pred_check_branch
        %208 = sbr.rel (%p206) target = $region16
      $region15: #{tpu_custom_call.1} parent=11 // pred_region
        _
      $region16: #{tpu_custom_call.1} parent=11 // pred_fallthru
        _
      // Predicated region
      $region17: #{tpu_custom_call.1} parent=11 // pred_check
        %p209 = pneg %p81
      $region18: #{tpu_custom_call.1} parent=11 // pred_check_branch
        %211 = sbr.rel (%p209) target = $region20
      $region19: #{tpu_custom_call.1} parent=11 // pred_region
        _
      $region20: #{tpu_custom_call.1} parent=11 // pred_fallthru
        _
      // Predicated region
      $region21: #{tpu_custom_call.1} parent=11 // pred_check
        %p212 = pneg %p102
      $region22: #{tpu_custom_call.1} parent=11 // pred_check_branch
        %214 = sbr.rel (%p212) target = $region24
      $region23: #{tpu_custom_call.1} parent=11 // pred_region
        _
      $region24: #{tpu_custom_call.1} parent=11 // pred_fallthru
        _
      // Predicated region
      $region25: #{tpu_custom_call.1} parent=11 // pred_check
        %p215 = pneg %p123
      $region26: #{tpu_custom_call.1} parent=11 // pred_check_branch
        %217 = sbr.rel (%p215) target = $region28
      $region27: #{tpu_custom_call.1} parent=11 // pred_region
        _
      $region28: #{tpu_custom_call.1} parent=11 // pred_fallthru
        _
      // Predicated region
      $region29: #{tpu_custom_call.1} parent=11 // pred_check
        %p218 = pneg %p144
      $region30: #{tpu_custom_call.1} parent=11 // pred_check_branch
        %220 = sbr.rel (%p218) target = $region32
      $region31: #{tpu_custom_call.1} parent=11 // pred_region
        _
      $region32: #{tpu_custom_call.1} parent=11 // pred_fallthru
        _
      // Predicated region
      $region33: #{tpu_custom_call.1} parent=11 // pred_check
        %p221 = pneg %p165
      $region34: #{tpu_custom_call.1} parent=11 // pred_check_branch
        %223 = sbr.rel (%p221) target = $region36
      $region35: #{tpu_custom_call.1} parent=11 // pred_region
        _
      $region36: #{tpu_custom_call.1} parent=11 // pred_fallthru
        _
    $region12: #{tpu_custom_call.1} parent=5 // pred_fallthru
      _
    %p224 = scmp.lt.s32.totalorder %s13, 2
    // Predicated region
    $region37: #{tpu_custom_call.1} parent=5 // pred_check
      %p225 = pneg %p224
    $region38: #{tpu_custom_call.1} parent=5 // pred_check_branch
      %227 = sbr.rel (%p225) target = $region40
    $region39: #{tpu_custom_call.1} parent=5 // pred_region
      // Predicated region
      $region41: #{tpu_custom_call.1} parent=39 // pred_check
        %p228 = pneg %p33
      $region42: #{tpu_custom_call.1} parent=39 // pred_check_branch
        %230 = sbr.rel (%p228) target = $region44
      $region43: #{tpu_custom_call.1} parent=39 // pred_region
        %p231 = scmp.lt.s32.totalorder %s13, 1
        %s232 = scalar_select %p231, %s13, 1
        %s233 = smul.addr %s232, 32
        %s234 = smul.addr %s233, 8
        %s235 = scalar_lea.vmem %s0, %s234
      $region44: #{tpu_custom_call.1} parent=39 // pred_fallthru
        _
    $region40: #{tpu_custom_call.1} parent=5 // pred_fallthru
      _
    %p236 = scmp.le.s32.totalorder 1, %s13
    %p237 = scmp.lt.s32.totalorder %s13, 3
    %p238 = pnand %p236, %p237
    %p239 = pneg %p238
    // Predicated region
    $region45: #{tpu_custom_call.1} parent=5 // pred_check
      _
    $region46: #{tpu_custom_call.1} parent=5 // pred_check_branch
      %241 = sbr.rel (%p238) target = $region48
    $region47: #{tpu_custom_call.1} parent=5 // pred_region
      %s242 = ssub.s32 %s13, 1
      %p243 = scmp.lt.s32.totalorder %s18, 1
      %s244 = scalar_select %p243, %s18, 1
      %s245 = smul.addr %s244, 32
      %s246 = smul.addr %s245, 8
      %s247 = scalar_lea.vmem %s0, %s246
      %p248 = pneg %p39
      %p249 = pneg %p36
      %p250 = pneg %p60
      %p251 = pneg %p57
      %p252 = pneg %p81
      %p253 = pneg %p78
      %p254 = pneg %p102
      %p255 = pneg %p99
      %p256 = pneg %p123
      %p257 = pneg %p120
      %p258 = pneg %p144
      %p259 = pneg %p141
      %p260 = pneg %p165
      %p261 = pneg %p162
      %p262 = pneg %p191
      %p263 = pneg %p188
      %p264 = scmp.lt.s32.totalorder %s18, 1
      %s265 = scalar_select %p264, %s18, 1
      %s266 = smul.addr %s265, 32
      %s267 = smul.addr %s266, 8
      %s268 = scalar_lea.vmem %s7, %s267
      %p269 = scmp.lt.s32.totalorder %s18, 1
      %s270 = scalar_select %p269, %s18, 1
      %s271 = smul.addr %s270, 32
      %s272 = smul.addr %s271, 8
      %s273 = scalar_lea.vmem %s0, %s272
      %p274 = scmp.lt.s32.totalorder %s18, 1
      %s275 = scalar_select %p274, %s18, 1
      %s276 = smul.addr %s275, 32
      %s277 = smul.addr %s276, 8
      %s278 = scalar_lea.vmem %s7, %s277
      %v279 = vld [vmem:[%s273] sm:$0xff]
      %v280 = vld [vmem:[%s273 + $0x8] sm:$0xff]
      %v281 = vld [vmem:[%s273 + $0x10] sm:$0xff]
      %v282 = vld [vmem:[%s273 + $0x18] sm:$0xff]
      %v283 = vld [vmem:[%s273 + $0x20] sm:$0xff]
      %v284 = vld [vmem:[%s273 + $0x28] sm:$0xff]
      %v285 = vld [vmem:[%s273 + $0x30] sm:$0xff]
      %v286 = vld [vmem:[%s273 + $0x38] sm:$0xff]
      %v287 = vld [vmem:[%s273 + $0x40] sm:$0xff]
      %v288 = vld [vmem:[%s273 + $0x48] sm:$0xff]
      %v289 = vld [vmem:[%s273 + $0x50] sm:$0xff]
      %v290 = vld [vmem:[%s273 + $0x58] sm:$0xff]
      %v291 = vld [vmem:[%s273 + $0x60] sm:$0xff]
      %v292 = vld [vmem:[%s273 + $0x68] sm:$0xff]
      %v293 = vld [vmem:[%s273 + $0x70] sm:$0xff]
      %v294 = vld [vmem:[%s273 + $0x78] sm:$0xff]
      %v295 = vld [vmem:[%s273 + $0x80] sm:$0xff]
      %v296 = vld [vmem:[%s273 + $0x88] sm:$0xff]
      %v297 = vld [vmem:[%s273 + $0x90] sm:$0xff]
      %v298 = vld [vmem:[%s273 + $0x98] sm:$0xff]
      %v299 = vld [vmem:[%s273 + $0xa0] sm:$0xff]
      %v300 = vld [vmem:[%s273 + $0xa8] sm:$0xff]
      %v301 = vld [vmem:[%s273 + $0xb0] sm:$0xff]
      %v302 = vld [vmem:[%s273 + $0xb8] sm:$0xff]
      %v303 = vld [vmem:[%s273 + $0xc0] sm:$0xff]
      %v304 = vld [vmem:[%s273 + $0xc8] sm:$0xff]
      %v305 = vld [vmem:[%s273 + $0xd0] sm:$0xff]
      %v306 = vld [vmem:[%s273 + $0xd8] sm:$0xff]
      %v307 = vld [vmem:[%s273 + $0xe0] sm:$0xff]
      %v308 = vld [vmem:[%s273 + $0xe8] sm:$0xff]
      %v309 = vld [vmem:[%s273 + $0xf0] sm:$0xff]
      %v310 = vld [vmem:[%s273 + $0xf8] sm:$0xff]
      %v311 = vld [vmem:[%s1] sm:$0xf]
      %v312 = vld [vmem:[%s2] sm:$0x1]
      %v314 = vlaneseq
      %v315 = vshrl.u32 %v314, 7
      %v316 = vsub.s32 0, %v315
      %v317 = vrot.slane %v312, %v316
      %vm319 = vcmask 31744
      %v321 = vsel %vm319, %v279, 0
      %v324 = vsel %vm319, %v280, 0
      %v327 = vsel %vm319, %v281, 0
      %v330 = vsel %vm319, %v282, 0
      %v333 = vsel %vm319, %v283, 0
      %v336 = vsel %vm319, %v284, 0
      %v339 = vsel %vm319, %v285, 0
      %v342 = vsel %vm319, %v286, 0
      %v345 = vsel %vm319, %v287, 0
      %v348 = vsel %vm319, %v288, 0
      %v351 = vsel %vm319, %v289, 0
      %v354 = vsel %vm319, %v290, 0
      %v357 = vsel %vm319, %v291, 0
      %v360 = vsel %vm319, %v292, 0
      %v363 = vsel %vm319, %v293, 0
      %v366 = vsel %vm319, %v294, 0
      %v369 = vsel %vm319, %v295, 0
      %v372 = vsel %vm319, %v296, 0
      %v375 = vsel %vm319, %v297, 0
      %v378 = vsel %vm319, %v298, 0
      %v381 = vsel %vm319, %v299, 0
      %v384 = vsel %vm319, %v300, 0
      %v387 = vsel %vm319, %v301, 0
      %v390 = vsel %vm319, %v302, 0
      %v393 = vsel %vm319, %v303, 0
      %v396 = vsel %vm319, %v304, 0
      %v399 = vsel %vm319, %v305, 0
      %v402 = vsel %vm319, %v306, 0
      %v405 = vsel %vm319, %v307, 0
      %v408 = vsel %vm319, %v308, 0
      %v411 = vsel %vm319, %v309, 0
      %v414 = vsel %vm319, %v310, 0
      %vm416 = vcmask 1043456
      %v418 = vsel %vm416, %v311, 0
      %420 = vmatprep.subr.mxu0 0.0
      %421 = vmatpush1.msra.mxu0 %v418
      %422 = vmatprep.subr.mxu0 0.0
      %423 = vmatpush1.msra.mxu0 0.0
      %424 = vmatprep.subr.mxu0 0.0
      %425 = vmatpush1.msra.mxu0 0.0
      %426 = vmatprep.subr.mxu0 0.0
      %427 = vmatpush1.msra.mxu0 0.0
      %428 = vmatprep.subr.mxu0 0.0
      %429 = vmatpush1.msra.mxu0 0.0
      %430 = vmatprep.subr.mxu0 0.0
      %431 = vmatpush1.msra.mxu0 0.0
      %432 = vmatprep.subr.mxu0 0.0
      %433 = vmatpush1.msra.mxu0 0.0
      %434 = vmatprep.subr.mxu0 0.0
      %435 = vmatpush1.msra.mxu0 0.0
      %436 = vmatprep.subr.mxu0 0.0
      %437 = vmatpush1.msra.mxu0 0.0
      %438 = vmatprep.subr.mxu0 0.0
      %439 = vmatpush1.msra.mxu0 0.0
      %440 = vmatprep.subr.mxu0 0.0
      %441 = vmatpush1.msra.mxu0 0.0
      %442 = vmatprep.subr.mxu0 0.0
      %443 = vmatpush1.msra.mxu0 0.0
      %444 = vmatprep.subr.mxu0 0.0
      %445 = vmatpush1.msra.mxu0 0.0
      %446 = vmatprep.subr.mxu0 0.0
      %447 = vmatpush1.msra.mxu0 0.0
      %448 = vmatprep.subr.mxu0 0.0
      %449 = vmatpush1.msra.mxu0 0.0
      %450 = vmatprep.subr.mxu0 0.0
      %451 = vmatpush1.msra.mxu0 0.0
      %452 = vmatprep.subr.mxu0 0.0
      %453 = vmatpush1.msra.mxu0 0.0
      %454 = vmatprep.subr.mxu0 0.0
      %455 = vmatpush1.msra.mxu0 0.0
      %456 = vmatprep.subr.mxu0 0.0
      %457 = vmatpush1.msra.mxu0 0.0
      %458 = vmatprep.subr.mxu0 0.0
      %459 = vmatpush1.msra.mxu0 0.0
      %460 = vmatprep.subr.mxu0 0.0
      %461 = vmatpush1.msra.mxu0 0.0
      %462 = vmatprep.subr.mxu0 0.0
      %463 = vmatpush1.msra.mxu0 0.0
      %464 = vmatprep.subr.mxu0 0.0
      %465 = vmatpush1.msra.mxu0 0.0
      %466 = vmatprep.subr.mxu0 0.0
      %467 = vmatpush1.msra.mxu0 0.0
      %468 = vmatprep.subr.mxu0 0.0
      %469 = vmatpush1.msra.mxu0 0.0
      %470 = vmatprep.subr.mxu0 0.0
      %471 = vmatpush1.msra.mxu0 0.0
      %472 = vmatprep.subr.mxu0 0.0
      %473 = vmatpush1.msra.mxu0 0.0
      %474 = vmatprep.subr.mxu0 0.0
      %475 = vmatpush1.msra.mxu0 0.0
      %476 = vmatprep.subr.mxu0 0.0
      %477 = vmatpush1.msra.mxu0 0.0
      %478 = vmatprep.subr.mxu0 0.0
      %479 = vmatpush1.msra.mxu0 0.0
      %480 = vmatprep.subr.mxu0 0.0
      %481 = vmatpush1.msra.mxu0 0.0
      %482 = vmatprep.subr.mxu0 0.0
      %483 = vmatpush1.msra.mxu0 0.0
      %484 = vmatprep.mubr.f32.mxu0 0.0
      %485 = vmatmul.mubr.f32.gmra.mrb[0].mxu0 %v321
      %v486 = vpop.f32.mrb[0].mxu0
      %v487 = vadd.f32 %v317, %v486
      %v488 = vpop.f32.mrb[0].mxu0
      %489 = vmatprep.mubr.f32.mxu0 0.0
      %490 = vmatmul.mubr.f32.gmra.mrb[0].mxu0 %v324
      %v491 = vpop.f32.mrb[0].mxu0
      %v492 = vadd.f32 %v317, %v491
      %v493 = vpop.f32.mrb[0].mxu0
      %494 = vmatprep.mubr.f32.mxu0 0.0
      %495 = vmatmul.mubr.f32.gmra.mrb[0].mxu0 %v327
      %v496 = vpop.f32.mrb[0].mxu0
      %v497 = vadd.f32 %v317, %v496
      %v498 = vpop.f32.mrb[0].mxu0
      %499 = vmatprep.mubr.f32.mxu0 0.0
      %500 = vmatmul.mubr.f32.gmra.mrb[0].mxu0 %v330
      %v501 = vpop.f32.mrb[0].mxu0
      %v502 = vadd.f32 %v317, %v501
      %v503 = vpop.f32.mrb[0].mxu0
      %504 = vmatprep.mubr.f32.mxu0 0.0
      %505 = vmatmul.mubr.f32.gmra.mrb[0].mxu0 %v333
      %v506 = vpop.f32.mrb[0].mxu0
      %v507 = vadd.f32 %v317, %v506
      %v508 = vpop.f32.mrb[0].mxu0
      %509 = vmatprep.mubr.f32.mxu0 0.0
      %510 = vmatmul.mubr.f32.gmra.mrb[0].mxu0 %v336
      %v511 = vpop.f32.mrb[0].mxu0
      %v512 = vadd.f32 %v317, %v511
      %v513 = vpop.f32.mrb[0].mxu0
      %514 = vmatprep.mubr.f32.mxu0 0.0
      %515 = vmatmul.mubr.f32.gmra.mrb[0].mxu0 %v339
      %v516 = vpop.f32.mrb[0].mxu0
      %v517 = vadd.f32 %v317, %v516
      %v518 = vpop.f32.mrb[0].mxu0
      %519 = vmatprep.mubr.f32.mxu0 0.0
      %520 = vmatmul.mubr.f32.gmra.mrb[0].mxu0 %v342
      %v521 = vpop.f32.mrb[0].mxu0
      %v522 = vadd.f32 %v317, %v521
      %v523 = vpop.f32.mrb[0].mxu0
      %524 = vmatprep.mubr.f32.mxu0 0.0
      %525 = vmatmul.mubr.f32.gmra.mrb[0].mxu0 %v345
      %v526 = vpop.f32.mrb[0].mxu0
      %v527 = vadd.f32 %v317, %v526
      %v528 = vpop.f32.mrb[0].mxu0
      %529 = vmatprep.mubr.f32.mxu0 0.0
      %530 = vmatmul.mubr.f32.gmra.mrb[0].mxu0 %v348
      %v531 = vpop.f32.mrb[0].mxu0
      %v532 = vadd.f32 %v317, %v531
      %v533 = vpop.f32.mrb[0].mxu0
      %534 = vmatprep.mubr.f32.mxu0 0.0
      %535 = vmatmul.mubr.f32.gmra.mrb[0].mxu0 %v351
      %v536 = vpop.f32.mrb[0].mxu0
      %v537 = vadd.f32 %v317, %v536
      %v538 = vpop.f32.mrb[0].mxu0
      %539 = vmatprep.mubr.f32.mxu0 0.0
      %540 = vmatmul.mubr.f32.gmra.mrb[0].mxu0 %v354
      %v541 = vpop.f32.mrb[0].mxu0
      %v542 = vadd.f32 %v317, %v541
      %v543 = vpop.f32.mrb[0].mxu0
      %544 = vmatprep.mubr.f32.mxu0 0.0
      %545 = vmatmul.mubr.f32.gmra.mrb[0].mxu0 %v357
      %v546 = vpop.f32.mrb[0].mxu0
      %v547 = vadd.f32 %v317, %v546
      %v548 = vpop.f32.mrb[0].mxu0
      %549 = vmatprep.mubr.f32.mxu0 0.0
      %550 = vmatmul.mubr.f32.gmra.mrb[0].mxu0 %v360
      %v551 = vpop.f32.mrb[0].mxu0
      %v552 = vadd.f32 %v317, %v551
      %v553 = vpop.f32.mrb[0].mxu0
      %554 = vmatprep.mubr.f32.mxu0 0.0
      %555 = vmatmul.mubr.f32.gmra.mrb[0].mxu0 %v363
      %v556 = vpop.f32.mrb[0].mxu0
      %v557 = vadd.f32 %v317, %v556
      %v558 = vpop.f32.mrb[0].mxu0
      %559 = vmatprep.mubr.f32.mxu0 0.0
      %560 = vmatmul.mubr.f32.gmra.mrb[0].mxu0 %v366
      %v561 = vpop.f32.mrb[0].mxu0
      %v562 = vadd.f32 %v317, %v561
      %v563 = vpop.f32.mrb[0].mxu0
      %564 = vmatprep.mubr.f32.mxu0 0.0
      %565 = vmatmul.mubr.f32.gmra.mrb[0].mxu0 %v369
      %v566 = vpop.f32.mrb[0].mxu0
      %v567 = vadd.f32 %v317, %v566
      %v568 = vpop.f32.mrb[0].mxu0
      %569 = vmatprep.mubr.f32.mxu0 0.0
      %570 = vmatmul.mubr.f32.gmra.mrb[0].mxu0 %v372
      %v571 = vpop.f32.mrb[0].mxu0
      %v572 = vadd.f32 %v317, %v571
      %v573 = vpop.f32.mrb[0].mxu0
      %574 = vmatprep.mubr.f32.mxu0 0.0
      %575 = vmatmul.mubr.f32.gmra.mrb[0].mxu0 %v375
      %v576 = vpop.f32.mrb[0].mxu0
      %v577 = vadd.f32 %v317, %v576
      %v578 = vpop.f32.mrb[0].mxu0
      %579 = vmatprep.mubr.f32.mxu0 0.0
      %580 = vmatmul.mubr.f32.gmra.mrb[0].mxu0 %v378
      %v581 = vpop.f32.mrb[0].mxu0
      %v582 = vadd.f32 %v317, %v581
      %v583 = vpop.f32.mrb[0].mxu0
      %584 = vmatprep.mubr.f32.mxu0 0.0
      %585 = vmatmul.mubr.f32.gmra.mrb[0].mxu0 %v381
      %v586 = vpop.f32.mrb[0].mxu0
      %v587 = vadd.f32 %v317, %v586
      %v588 = vpop.f32.mrb[0].mxu0
      %589 = vmatprep.mubr.f32.mxu0 0.0
      %590 = vmatmul.mubr.f32.gmra.mrb[0].mxu0 %v384
      %v591 = vpop.f32.mrb[0].mxu0
      %v592 = vadd.f32 %v317, %v591
      %v593 = vpop.f32.mrb[0].mxu0
      %594 = vmatprep.mubr.f32.mxu0 0.0
      %595 = vmatmul.mubr.f32.gmra.mrb[0].mxu0 %v387
      %v596 = vpop.f32.mrb[0].mxu0
      %v597 = vadd.f32 %v317, %v596
      %v598 = vpop.f32.mrb[0].mxu0
      %599 = vmatprep.mubr.f32.mxu0 0.0
      %600 = vmatmul.mubr.f32.gmra.mrb[0].mxu0 %v390
      %v601 = vpop.f32.mrb[0].mxu0
      %v602 = vadd.f32 %v317, %v601
      %v603 = vpop.f32.mrb[0].mxu0
      %604 = vmatprep.mubr.f32.mxu0 0.0
      %605 = vmatmul.mubr.f32.gmra.mrb[0].mxu0 %v393
      %v606 = vpop.f32.mrb[0].mxu0
      %v607 = vadd.f32 %v317, %v606
      %v608 = vpop.f32.mrb[0].mxu0
      %609 = vmatprep.mubr.f32.mxu0 0.0
      %610 = vmatmul.mubr.f32.gmra.mrb[0].mxu0 %v396
      %v611 = vpop.f32.mrb[0].mxu0
      %v612 = vadd.f32 %v317, %v611
      %v613 = vpop.f32.mrb[0].mxu0
      %614 = vmatprep.mubr.f32.mxu0 0.0
      %615 = vmatmul.mubr.f32.gmra.mrb[0].mxu0 %v399
      %v616 = vpop.f32.mrb[0].mxu0
      %v617 = vadd.f32 %v317, %v616
      %v618 = vpop.f32.mrb[0].mxu0
      %619 = vmatprep.mubr.f32.mxu0 0.0
      %620 = vmatmul.mubr.f32.gmra.mrb[0].mxu0 %v402
      %v621 = vpop.f32.mrb[0].mxu0
      %v622 = vadd.f32 %v317, %v621
      %v623 = vpop.f32.mrb[0].mxu0
      %624 = vmatprep.mubr.f32.mxu0 0.0
      %625 = vmatmul.mubr.f32.gmra.mrb[0].mxu0 %v405
      %v626 = vpop.f32.mrb[0].mxu0
      %v627 = vadd.f32 %v317, %v626
      %v628 = vpop.f32.mrb[0].mxu0
      %629 = vmatprep.mubr.f32.mxu0 0.0
      %630 = vmatmul.mubr.f32.gmra.mrb[0].mxu0 %v408
      %v631 = vpop.f32.mrb[0].mxu0
      %v632 = vadd.f32 %v317, %v631
      %v633 = vpop.f32.mrb[0].mxu0
      %634 = vmatprep.mubr.f32.mxu0 0.0
      %635 = vmatmul.mubr.f32.gmra.mrb[0].mxu0 %v411
      %v636 = vpop.f32.mrb[0].mxu0
      %v637 = vadd.f32 %v317, %v636
      %v638 = vpop.f32.mrb[0].mxu0
      %639 = vmatprep.mubr.f32.mxu0 0.0
      %640 = vmatmul.mubr.f32.gmra.mrb[0].mxu0 %v414
      %v641 = vpop.f32.mrb[0].mxu0
      %v642 = vadd.f32 %v317, %v641
      %v643 = vpop.f32.mrb[0].mxu0
      %644 = vdwg.mxu0
      %v645 = vmax.f32 %v487, 0.0
      %v646 = vmax.f32 %v492, 0.0
      %v647 = vmax.f32 %v497, 0.0
      %v648 = vmax.f32 %v502, 0.0
      %v649 = vmax.f32 %v507, 0.0
      %v650 = vmax.f32 %v512, 0.0
      %v651 = vmax.f32 %v517, 0.0
      %v652 = vmax.f32 %v522, 0.0
      %v653 = vmax.f32 %v527, 0.0
      %v654 = vmax.f32 %v532, 0.0
      %v655 = vmax.f32 %v537, 0.0
      %v656 = vmax.f32 %v542, 0.0
      %v657 = vmax.f32 %v547, 0.0
      %v658 = vmax.f32 %v552, 0.0
      %v659 = vmax.f32 %v557, 0.0
      %v660 = vmax.f32 %v562, 0.0
      %v661 = vmax.f32 %v567, 0.0
      %v662 = vmax.f32 %v572, 0.0
      %v663 = vmax.f32 %v577, 0.0
      %v664 = vmax.f32 %v582, 0.0
      %v665 = vmax.f32 %v587, 0.0
      %v666 = vmax.f32 %v592, 0.0
      %v667 = vmax.f32 %v597, 0.0
      %v668 = vmax.f32 %v602, 0.0
      %v669 = vmax.f32 %v607, 0.0
      %v670 = vmax.f32 %v612, 0.0
      %v671 = vmax.f32 %v617, 0.0
      %v672 = vmax.f32 %v622, 0.0
      %v673 = vmax.f32 %v627, 0.0
      %v674 = vmax.f32 %v632, 0.0
      %v675 = vmax.f32 %v637, 0.0
      %v676 = vmax.f32 %v642, 0.0
      %v677 = vld [vmem:[%s3] sm:$0xff]
      %v678 = vld [vmem:[%s3 + $0x8] sm:$0x1]
      %v679 = vlaneseq
      %v680 = vshrl.u32 %v679, 7
      %v681 = vadd.s32 %v680, 8
      %vm682 = vcmp.eq.s32.totalorder %v680, 0
      %vm683 = vcmp.eq.s32.totalorder %v681, 0
      %v684 = vrot.slane %v645, 7
      %v685 = vrot.slane %v647, 7
      %v686 = vrot.slane %v649, 7
      %v687 = vrot.slane %v651, 7
      %v688 = vrot.slane %v653, 7
      %v689 = vrot.slane %v655, 7
      %v690 = vrot.slane %v657, 7
      %v691 = vrot.slane %v659, 7
      %v692 = vrot.slane %v661, 7
      %v693 = vrot.slane %v663, 7
      %v694 = vrot.slane %v665, 7
      %v695 = vrot.slane %v667, 7
      %v696 = vrot.slane %v669, 7
      %v697 = vrot.slane %v671, 7
      %v698 = vrot.slane %v673, 7
      %v699 = vrot.slane %v675, 7
      %v700 = vrot.slane %v646, 7
      %v701 = vrot.slane %v648, 7
      %v702 = vrot.slane %v650, 7
      %v703 = vrot.slane %v652, 7
      %v704 = vrot.slane %v654, 7
      %v705 = vrot.slane %v656, 7
      %v706 = vrot.slane %v658, 7
      %v707 = vrot.slane %v660, 7
      %v708 = vrot.slane %v662, 7
      %v709 = vrot.slane %v664, 7
      %v710 = vrot.slane %v666, 7
      %v711 = vrot.slane %v668, 7
      %v712 = vrot.slane %v670, 7
      %v713 = vrot.slane %v672, 7
      %v714 = vrot.slane %v674, 7
      %v715 = vrot.slane %v676, 7
      %vm716 = vcmp.lt.s32.totalorder %v680, 1
      %v717 = vsel %vm716, %v684, %v700
      %v718 = vsel %vm716, %v685, %v701
      %v719 = vsel %vm716, %v686, %v702
      %v720 = vsel %vm716, %v687, %v703
      %v721 = vsel %vm716, %v688, %v704
      %v722 = vsel %vm716, %v689, %v705
      %v723 = vsel %vm716, %v690, %v706
      %v724 = vsel %vm716, %v691, %v707
      %v725 = vsel %vm716, %v692, %v708
      %v726 = vsel %vm716, %v693, %v709
      %v727 = vsel %vm716, %v694, %v710
      %v728 = vsel %vm716, %v695, %v711
      %v729 = vsel %vm716, %v696, %v712
      %v730 = vsel %vm716, %v697, %v713
      %v731 = vsel %vm716, %v698, %v714
      %v732 = vsel %vm716, %v699, %v715
      %v733 = vsel %vm716, %v700, %v684
      %v734 = vsel %vm716, %v701, %v685
      %v735 = vsel %vm716, %v702, %v686
      %v736 = vsel %vm716, %v703, %v687
      %v737 = vsel %vm716, %v704, %v688
      %v738 = vsel %vm716, %v705, %v689
      %v739 = vsel %vm716, %v706, %v690
      %v740 = vsel %vm716, %v707, %v691
      %v741 = vsel %vm716, %v708, %v692
      %v742 = vsel %vm716, %v709, %v693
      %v743 = vsel %vm716, %v710, %v694
      %v744 = vsel %vm716, %v711, %v695
      %v745 = vsel %vm716, %v712, %v696
      %v746 = vsel %vm716, %v713, %v697
      %v747 = vsel %vm716, %v714, %v698
      %v748 = vsel %vm716, %v715, %v699
      %v749 = vsel %vm682, 0.0, %v733
      %v750 = vsel %vm683, 0.0, %v717
      %v751 = vsel %vm682, 0.0, %v734
      %v752 = vsel %vm683, 0.0, %v718
      %v753 = vsel %vm682, 0.0, %v735
      %v754 = vsel %vm683, 0.0, %v719
      %v755 = vsel %vm682, 0.0, %v736
      %v756 = vsel %vm683, 0.0, %v720
      %v757 = vsel %vm682, 0.0, %v737
      %v758 = vsel %vm683, 0.0, %v721
      %v759 = vsel %vm682, 0.0, %v738
      %v760 = vsel %vm683, 0.0, %v722
      %v761 = vsel %vm682, 0.0, %v739
      %v762 = vsel %vm683, 0.0, %v723
      %v763 = vsel %vm682, 0.0, %v740
      %v764 = vsel %vm683, 0.0, %v724
      %v765 = vsel %vm682, 0.0, %v741
      %v766 = vsel %vm683, 0.0, %v725
      %v767 = vsel %vm682, 0.0, %v742
      %v768 = vsel %vm683, 0.0, %v726
      %v769 = vsel %vm682, 0.0, %v743
      %v770 = vsel %vm683, 0.0, %v727
      %v771 = vsel %vm682, 0.0, %v744
      %v772 = vsel %vm683, 0.0, %v728
      %v773 = vsel %vm682, 0.0, %v745
      %v774 = vsel %vm683, 0.0, %v729
      %v775 = vsel %vm682, 0.0, %v746
      %v776 = vsel %vm683, 0.0, %v730
      %v777 = vsel %vm682, 0.0, %v747
      %v778 = vsel %vm683, 0.0, %v731
      %v779 = vsel %vm682, 0.0, %v748
      %v780 = vsel %vm683, 0.0, %v732
      %vm781 = vcmp.eq.s32.totalorder %v680, 15
      %vm782 = vcmp.eq.s32.totalorder %v681, 15
      %v783 = vrot.slane %v645, 1
      %v784 = vrot.slane %v647, 1
      %v785 = vrot.slane %v649, 1
      %v786 = vrot.slane %v651, 1
      %v787 = vrot.slane %v653, 1
      %v788 = vrot.slane %v655, 1
      %v789 = vrot.slane %v657, 1
      %v790 = vrot.slane %v659, 1
      %v791 = vrot.slane %v661, 1
      %v792 = vrot.slane %v663, 1
      %v793 = vrot.slane %v665, 1
      %v794 = vrot.slane %v667, 1
      %v795 = vrot.slane %v669, 1
      %v796 = vrot.slane %v671, 1
      %v797 = vrot.slane %v673, 1
      %v798 = vrot.slane %v675, 1
      %v799 = vrot.slane %v646, 1
      %v800 = vrot.slane %v648, 1
      %v801 = vrot.slane %v650, 1
      %v802 = vrot.slane %v652, 1
      %v803 = vrot.slane %v654, 1
      %v804 = vrot.slane %v656, 1
      %v805 = vrot.slane %v658, 1
      %v806 = vrot.slane %v660, 1
      %v807 = vrot.slane %v662, 1
      %v808 = vrot.slane %v664, 1
      %v809 = vrot.slane %v666, 1
      %v810 = vrot.slane %v668, 1
      %v811 = vrot.slane %v670, 1
      %v812 = vrot.slane %v672, 1
      %v813 = vrot.slane %v674, 1
      %v814 = vrot.slane %v676, 1
      %vm815 = vcmp.lt.s32.totalorder %v680, 7
      %v816 = vsel %vm815, %v783, %v799
      %v817 = vsel %vm815, %v784, %v800
      %v818 = vsel %vm815, %v785, %v801
      %v819 = vsel %vm815, %v786, %v802
      %v820 = vsel %vm815, %v787, %v803
      %v821 = vsel %vm815, %v788, %v804
      %v822 = vsel %vm815, %v789, %v805
      %v823 = vsel %vm815, %v790, %v806
      %v824 = vsel %vm815, %v791, %v807
      %v825 = vsel %vm815, %v792, %v808
      %v826 = vsel %vm815, %v793, %v809
      %v827 = vsel %vm815, %v794, %v810
      %v828 = vsel %vm815, %v795, %v811
      %v829 = vsel %vm815, %v796, %v812
      %v830 = vsel %vm815, %v797, %v813
      %v831 = vsel %vm815, %v798, %v814
      %v832 = vsel %vm815, %v799, %v783
      %v833 = vsel %vm815, %v800, %v784
      %v834 = vsel %vm815, %v801, %v785
      %v835 = vsel %vm815, %v802, %v786
      %v836 = vsel %vm815, %v803, %v787
      %v837 = vsel %vm815, %v804, %v788
      %v838 = vsel %vm815, %v805, %v789
      %v839 = vsel %vm815, %v806, %v790
      %v840 = vsel %vm815, %v807, %v791
      %v841 = vsel %vm815, %v808, %v792
      %v842 = vsel %vm815, %v809, %v793
      %v843 = vsel %vm815, %v810, %v794
      %v844 = vsel %vm815, %v811, %v795
      %v845 = vsel %vm815, %v812, %v796
      %v846 = vsel %vm815, %v813, %v797
      %v847 = vsel %vm815, %v814, %v798
      %v848 = vsel %vm781, 0.0, %v816
      %v849 = vsel %vm782, 0.0, %v832
      %v850 = vsel %vm781, 0.0, %v817
      %v851 = vsel %vm782, 0.0, %v833
      %v852 = vsel %vm781, 0.0, %v818
      %v853 = vsel %vm782, 0.0, %v834
      %v854 = vsel %vm781, 0.0, %v819
      %v855 = vsel %vm782, 0.0, %v835
      %v856 = vsel %vm781, 0.0, %v820
      %v857 = vsel %vm782, 0.0, %v836
      %v858 = vsel %vm781, 0.0, %v821
      %v859 = vsel %vm782, 0.0, %v837
      %v860 = vsel %vm781, 0.0, %v822
      %v861 = vsel %vm782, 0.0, %v838
      %v862 = vsel %vm781, 0.0, %v823
      %v863 = vsel %vm782, 0.0, %v839
      %v864 = vsel %vm781, 0.0, %v824
      %v865 = vsel %vm782, 0.0, %v840
      %v866 = vsel %vm781, 0.0, %v825
      %v867 = vsel %vm782, 0.0, %v841
      %v868 = vsel %vm781, 0.0, %v826
      %v869 = vsel %vm782, 0.0, %v842
      %v870 = vsel %vm781, 0.0, %v827
      %v871 = vsel %vm782, 0.0, %v843
      %v872 = vsel %vm781, 0.0, %v828
      %v873 = vsel %vm782, 0.0, %v844
      %v874 = vsel %vm781, 0.0, %v829
      %v875 = vsel %vm782, 0.0, %v845
      %v876 = vsel %vm781, 0.0, %v830
      %v877 = vsel %vm782, 0.0, %v846
      %v878 = vsel %vm781, 0.0, %v831
      %v879 = vsel %vm782, 0.0, %v847
      %v880 = vlaneseq
      %v881 = vshrl.u32 %v880, 7
      %v882 = vsub.s32 4, %v881
      %v883 = vrot.slane %v677, %v882
      %v884 = vmul.f32 %v645, %v883
      %v885 = vmul.f32 %v646, %v883
      %v886 = vmul.f32 %v647, %v883
      %v887 = vmul.f32 %v648, %v883
      %v888 = vmul.f32 %v649, %v883
      %v889 = vmul.f32 %v650, %v883
      %v890 = vmul.f32 %v651, %v883
      %v891 = vmul.f32 %v652, %v883
      %v892 = vmul.f32 %v653, %v883
      %v893 = vmul.f32 %v654, %v883
      %v894 = vmul.f32 %v655, %v883
      %v895 = vmul.f32 %v656, %v883
      %v896 = vmul.f32 %v657, %v883
      %v897 = vmul.f32 %v658, %v883
      %v898 = vmul.f32 %v659, %v883
      %v899 = vmul.f32 %v660, %v883
      %v900 = vmul.f32 %v661, %v883
      %v901 = vmul.f32 %v662, %v883
      %v902 = vmul.f32 %v663, %v883
      %v903 = vmul.f32 %v664, %v883
      %v904 = vmul.f32 %v665, %v883
      %v905 = vmul.f32 %v666, %v883
      %v906 = vmul.f32 %v667, %v883
      %v907 = vmul.f32 %v668, %v883
      %v908 = vmul.f32 %v669, %v883
      %v909 = vmul.f32 %v670, %v883
      %v910 = vmul.f32 %v671, %v883
      %v911 = vmul.f32 %v672, %v883
      %v912 = vmul.f32 %v673, %v883
      %v913 = vmul.f32 %v674, %v883
      %v914 = vmul.f32 %v675, %v883
      %v915 = vmul.f32 %v676, %v883
      %v916 = vld [vmem:[%s4] sm:$0x1]
      %v918 = vlaneseq
      %v919 = vshrl.u32 %v918, 7
      %v920 = vsub.s32 0, %v919
      %v921 = vrot.slane %v916, %v920
      %v923 = vadd.f32 %v884, %v921
      %v924 = vadd.f32 %v885, %v921
      %v925 = vadd.f32 %v886, %v921
      %v926 = vadd.f32 %v887, %v921
      %v927 = vadd.f32 %v888, %v921
      %v928 = vadd.f32 %v889, %v921
      %v929 = vadd.f32 %v890, %v921
      %v930 = vadd.f32 %v891, %v921
      %v931 = vadd.f32 %v892, %v921
      %v932 = vadd.f32 %v893, %v921
      %v933 = vadd.f32 %v894, %v921
      %v934 = vadd.f32 %v895, %v921
      %v935 = vadd.f32 %v896, %v921
      %v936 = vadd.f32 %v897, %v921
      %v937 = vadd.f32 %v898, %v921
      %v938 = vadd.f32 %v899, %v921
      %v939 = vadd.f32 %v900, %v921
      %v940 = vadd.f32 %v901, %v921
      %v941 = vadd.f32 %v902, %v921
      %v942 = vadd.f32 %v903, %v921
      %v943 = vadd.f32 %v904, %v921
      %v944 = vadd.f32 %v905, %v921
      %v945 = vadd.f32 %v906, %v921
      %v946 = vadd.f32 %v907, %v921
      %v947 = vadd.f32 %v908, %v921
      %v948 = vadd.f32 %v909, %v921
      %v949 = vadd.f32 %v910, %v921
      %v950 = vadd.f32 %v911, %v921
      %v951 = vadd.f32 %v912, %v921
      %v952 = vadd.f32 %v913, %v921
      %v953 = vadd.f32 %v914, %v921
      %v954 = vadd.f32 %v915, %v921
      %v955 = vlaneseq
      %v956 = vshrl.u32 %v955, 7
      %v957 = vsub.s32 3, %v956
      %v958 = vrot.slane %v677, %v957
      %v959 = vmul.f32 %v749, %v958
      %v960 = vmul.f32 %v750, %v958
      %v961 = vmul.f32 %v751, %v958
      %v962 = vmul.f32 %v752, %v958
      %v963 = vmul.f32 %v753, %v958
      %v964 = vmul.f32 %v754, %v958
      %v965 = vmul.f32 %v755, %v958
      %v966 = vmul.f32 %v756, %v958
      %v967 = vmul.f32 %v757, %v958
      %v968 = vmul.f32 %v758, %v958
      %v969 = vmul.f32 %v759, %v958
      %v970 = vmul.f32 %v760, %v958
      %v971 = vmul.f32 %v761, %v958
      %v972 = vmul.f32 %v762, %v958
      %v973 = vmul.f32 %v763, %v958
      %v974 = vmul.f32 %v764, %v958
      %v975 = vmul.f32 %v765, %v958
      %v976 = vmul.f32 %v766, %v958
      %v977 = vmul.f32 %v767, %v958
      %v978 = vmul.f32 %v768, %v958
      %v979 = vmul.f32 %v769, %v958
      %v980 = vmul.f32 %v770, %v958
      %v981 = vmul.f32 %v771, %v958
      %v982 = vmul.f32 %v772, %v958
      %v983 = vmul.f32 %v773, %v958
      %v984 = vmul.f32 %v774, %v958
      %v985 = vmul.f32 %v775, %v958
      %v986 = vmul.f32 %v776, %v958
      %v987 = vmul.f32 %v777, %v958
      %v988 = vmul.f32 %v778, %v958
      %v989 = vmul.f32 %v779, %v958
      %v990 = vmul.f32 %v780, %v958
      %v991 = vadd.f32 %v923, %v959
      %v992 = vadd.f32 %v924, %v960
      %v993 = vadd.f32 %v925, %v961
      %v994 = vadd.f32 %v926, %v962
      %v995 = vadd.f32 %v927, %v963
      %v996 = vadd.f32 %v928, %v964
      %v997 = vadd.f32 %v929, %v965
      %v998 = vadd.f32 %v930, %v966
      %v999 = vadd.f32 %v931, %v967
      %v1000 = vadd.f32 %v932, %v968
      %v1001 = vadd.f32 %v933, %v969
      %v1002 = vadd.f32 %v934, %v970
      %v1003 = vadd.f32 %v935, %v971
      %v1004 = vadd.f32 %v936, %v972
      %v1005 = vadd.f32 %v937, %v973
      %v1006 = vadd.f32 %v938, %v974
      %v1007 = vadd.f32 %v939, %v975
      %v1008 = vadd.f32 %v940, %v976
      %v1009 = vadd.f32 %v941, %v977
      %v1010 = vadd.f32 %v942, %v978
      %v1011 = vadd.f32 %v943, %v979
      %v1012 = vadd.f32 %v944, %v980
      %v1013 = vadd.f32 %v945, %v981
      %v1014 = vadd.f32 %v946, %v982
      %v1015 = vadd.f32 %v947, %v983
      %v1016 = vadd.f32 %v948, %v984
      %v1017 = vadd.f32 %v949, %v985
      %v1018 = vadd.f32 %v950, %v986
      %v1019 = vadd.f32 %v951, %v987
      %v1020 = vadd.f32 %v952, %v988
      %v1021 = vadd.f32 %v953, %v989
      %v1022 = vadd.f32 %v954, %v990
      %v1023 = vlaneseq
      %v1024 = vshrl.u32 %v1023, 7
      %v1025 = vsub.s32 5, %v1024
      %v1026 = vrot.slane %v677, %v1025
      %v1027 = vmul.f32 %v848, %v1026
      %v1028 = vmul.f32 %v849, %v1026
      %v1029 = vmul.f32 %v850, %v1026
      %v1030 = vmul.f32 %v851, %v1026
      %v1031 = vmul.f32 %v852, %v1026
      %v1032 = vmul.f32 %v853, %v1026
      %v1033 = vmul.f32 %v854, %v1026
      %v1034 = vmul.f32 %v855, %v1026
      %v1035 = vmul.f32 %v856, %v1026
      %v1036 = vmul.f32 %v857, %v1026
      %v1037 = vmul.f32 %v858, %v1026
      %v1038 = vmul.f32 %v859, %v1026
      %v1039 = vmul.f32 %v860, %v1026
      %v1040 = vmul.f32 %v861, %v1026
      %v1041 = vmul.f32 %v862, %v1026
      %v1042 = vmul.f32 %v863, %v1026
      %v1043 = vmul.f32 %v864, %v1026
      %v1044 = vmul.f32 %v865, %v1026
      %v1045 = vmul.f32 %v866, %v1026
      %v1046 = vmul.f32 %v867, %v1026
      %v1047 = vmul.f32 %v868, %v1026
      %v1048 = vmul.f32 %v869, %v1026
      %v1049 = vmul.f32 %v870, %v1026
      %v1050 = vmul.f32 %v871, %v1026
      %v1051 = vmul.f32 %v872, %v1026
      %v1052 = vmul.f32 %v873, %v1026
      %v1053 = vmul.f32 %v874, %v1026
      %v1054 = vmul.f32 %v875, %v1026
      %v1055 = vmul.f32 %v876, %v1026
      %v1056 = vmul.f32 %v877, %v1026
      %v1057 = vmul.f32 %v878, %v1026
      %v1058 = vmul.f32 %v879, %v1026
      %v1059 = vadd.f32 %v991, %v1027
      %v1060 = vadd.f32 %v992, %v1028
      %v1061 = vadd.f32 %v993, %v1029
      %v1062 = vadd.f32 %v994, %v1030
      %v1063 = vadd.f32 %v995, %v1031
      %v1064 = vadd.f32 %v996, %v1032
      %v1065 = vadd.f32 %v997, %v1033
      %v1066 = vadd.f32 %v998, %v1034
      %v1067 = vadd.f32 %v999, %v1035
      %v1068 = vadd.f32 %v1000, %v1036
      %v1069 = vadd.f32 %v1001, %v1037
      %v1070 = vadd.f32 %v1002, %v1038
      %v1071 = vadd.f32 %v1003, %v1039
      %v1072 = vadd.f32 %v1004, %v1040
      %v1073 = vadd.f32 %v1005, %v1041
      %v1074 = vadd.f32 %v1006, %v1042
      %v1075 = vadd.f32 %v1007, %v1043
      %v1076 = vadd.f32 %v1008, %v1044
      %v1077 = vadd.f32 %v1009, %v1045
      %v1078 = vadd.f32 %v1010, %v1046
      %v1079 = vadd.f32 %v1011, %v1047
      %v1080 = vadd.f32 %v1012, %v1048
      %v1081 = vadd.f32 %v1013, %v1049
      %v1082 = vadd.f32 %v1014, %v1050
      %v1083 = vadd.f32 %v1015, %v1051
      %v1084 = vadd.f32 %v1016, %v1052
      %v1085 = vadd.f32 %v1017, %v1053
      %v1086 = vadd.f32 %v1018, %v1054
      %v1087 = vadd.f32 %v1019, %v1055
      %v1088 = vadd.f32 %v1020, %v1056
      %v1089 = vadd.f32 %v1021, %v1057
      %v1090 = vadd.f32 %v1022, %v1058
      %v1091 = vlaneseq
      %v1092 = vshrl.u32 %v1091, 7
      %v1093 = vsub.s32 1, %v1092
      %v1094 = vrot.slane %v677, %v1093
      %v1095 = vmul.f32 %v1094, 0.0
      %v1096 = vmul.f32 %v645, %v1094
      %v1097 = vmul.f32 %v646, %v1094
      %v1098 = vmul.f32 %v647, %v1094
      %v1099 = vmul.f32 %v648, %v1094
      %v1100 = vmul.f32 %v649, %v1094
      %v1101 = vmul.f32 %v650, %v1094
      %v1102 = vmul.f32 %v651, %v1094
      %v1103 = vmul.f32 %v652, %v1094
      %v1104 = vmul.f32 %v653, %v1094
      %v1105 = vmul.f32 %v654, %v1094
      %v1106 = vmul.f32 %v655, %v1094
      %v1107 = vmul.f32 %v656, %v1094
      %v1108 = vmul.f32 %v657, %v1094
      %v1109 = vmul.f32 %v658, %v1094
      %v1110 = vmul.f32 %v659, %v1094
      %v1111 = vmul.f32 %v660, %v1094
      %v1112 = vmul.f32 %v661, %v1094
      %v1113 = vmul.f32 %v662, %v1094
      %v1114 = vmul.f32 %v663, %v1094
      %v1115 = vmul.f32 %v664, %v1094
      %v1116 = vmul.f32 %v665, %v1094
      %v1117 = vmul.f32 %v666, %v1094
      %v1118 = vmul.f32 %v667, %v1094
      %v1119 = vmul.f32 %v668, %v1094
      %v1120 = vmul.f32 %v669, %v1094
      %v1121 = vmul.f32 %v670, %v1094
      %v1122 = vmul.f32 %v671, %v1094
      %v1123 = vmul.f32 %v672, %v1094
      %v1124 = vmul.f32 %v673, %v1094
      %v1125 = vmul.f32 %v674, %v1094
      %v1126 = vadd.f32 %v1059, %v1095
      %v1127 = vadd.f32 %v1060, %v1095
      %v1128 = vadd.f32 %v1061, %v1096
      %v1129 = vadd.f32 %v1062, %v1097
      %v1130 = vadd.f32 %v1063, %v1098
      %v1131 = vadd.f32 %v1064, %v1099
      %v1132 = vadd.f32 %v1065, %v1100
      %v1133 = vadd.f32 %v1066, %v1101
      %v1134 = vadd.f32 %v1067, %v1102
      %v1135 = vadd.f32 %v1068, %v1103
      %v1136 = vadd.f32 %v1069, %v1104
      %v1137 = vadd.f32 %v1070, %v1105
      %v1138 = vadd.f32 %v1071, %v1106
      %v1139 = vadd.f32 %v1072, %v1107
      %v1140 = vadd.f32 %v1073, %v1108
      %v1141 = vadd.f32 %v1074, %v1109
      %v1142 = vadd.f32 %v1075, %v1110
      %v1143 = vadd.f32 %v1076, %v1111
      %v1144 = vadd.f32 %v1077, %v1112
      %v1145 = vadd.f32 %v1078, %v1113
      %v1146 = vadd.f32 %v1079, %v1114
      %v1147 = vadd.f32 %v1080, %v1115
      %v1148 = vadd.f32 %v1081, %v1116
      %v1149 = vadd.f32 %v1082, %v1117
      %v1150 = vadd.f32 %v1083, %v1118
      %v1151 = vadd.f32 %v1084, %v1119
      %v1152 = vadd.f32 %v1085, %v1120
      %v1153 = vadd.f32 %v1086, %v1121
      %v1154 = vadd.f32 %v1087, %v1122
      %v1155 = vadd.f32 %v1088, %v1123
      %v1156 = vadd.f32 %v1089, %v1124
      %v1157 = vadd.f32 %v1090, %v1125
      %v1158 = vlaneseq
      %v1159 = vshrl.u32 %v1158, 7
      %v1160 = vsub.s32 0, %v1159
      %v1161 = vrot.slane %v677, %v1160
      %v1162 = vmul.f32 %v1161, 0.0
      %v1163 = vmul.f32 %v749, %v1161
      %v1164 = vmul.f32 %v750, %v1161
      %v1165 = vmul.f32 %v751, %v1161
      %v1166 = vmul.f32 %v752, %v1161
      %v1167 = vmul.f32 %v753, %v1161
      %v1168 = vmul.f32 %v754, %v1161
      %v1169 = vmul.f32 %v755, %v1161
      %v1170 = vmul.f32 %v756, %v1161
      %v1171 = vmul.f32 %v757, %v1161
      %v1172 = vmul.f32 %v758, %v1161
      %v1173 = vmul.f32 %v759, %v1161
      %v1174 = vmul.f32 %v760, %v1161
      %v1175 = vmul.f32 %v761, %v1161
      %v1176 = vmul.f32 %v762, %v1161
      %v1177 = vmul.f32 %v763, %v1161
      %v1178 = vmul.f32 %v764, %v1161
      %v1179 = vmul.f32 %v765, %v1161
      %v1180 = vmul.f32 %v766, %v1161
      %v1181 = vmul.f32 %v767, %v1161
      %v1182 = vmul.f32 %v768, %v1161
      %v1183 = vmul.f32 %v769, %v1161
      %v1184 = vmul.f32 %v770, %v1161
      %v1185 = vmul.f32 %v771, %v1161
      %v1186 = vmul.f32 %v772, %v1161
      %v1187 = vmul.f32 %v773, %v1161
      %v1188 = vmul.f32 %v774, %v1161
      %v1189 = vmul.f32 %v775, %v1161
      %v1190 = vmul.f32 %v776, %v1161
      %v1191 = vmul.f32 %v777, %v1161
      %v1192 = vmul.f32 %v778, %v1161
      %v1193 = vadd.f32 %v1126, %v1162
      %v1194 = vadd.f32 %v1127, %v1162
      %v1195 = vadd.f32 %v1128, %v1163
      %v1196 = vadd.f32 %v1129, %v1164
      %v1197 = vadd.f32 %v1130, %v1165
      %v1198 = vadd.f32 %v1131, %v1166
      %v1199 = vadd.f32 %v1132, %v1167
      %v1200 = vadd.f32 %v1133, %v1168
      %v1201 = vadd.f32 %v1134, %v1169
      %v1202 = vadd.f32 %v1135, %v1170
      %v1203 = vadd.f32 %v1136, %v1171
      %v1204 = vadd.f32 %v1137, %v1172
      %v1205 = vadd.f32 %v1138, %v1173
      %v1206 = vadd.f32 %v1139, %v1174
      %v1207 = vadd.f32 %v1140, %v1175
      %v1208 = vadd.f32 %v1141, %v1176
      %v1209 = vadd.f32 %v1142, %v1177
      %v1210 = vadd.f32 %v1143, %v1178
      %v1211 = vadd.f32 %v1144, %v1179
      %v1212 = vadd.f32 %v1145, %v1180
      %v1213 = vadd.f32 %v1146, %v1181
      %v1214 = vadd.f32 %v1147, %v1182
      %v1215 = vadd.f32 %v1148, %v1183
      %v1216 = vadd.f32 %v1149, %v1184
      %v1217 = vadd.f32 %v1150, %v1185
      %v1218 = vadd.f32 %v1151, %v1186
      %v1219 = vadd.f32 %v1152, %v1187
      %v1220 = vadd.f32 %v1153, %v1188
      %v1221 = vadd.f32 %v1154, %v1189
      %v1222 = vadd.f32 %v1155, %v1190
      %v1223 = vadd.f32 %v1156, %v1191
      %v1224 = vadd.f32 %v1157, %v1192
      %v1225 = vlaneseq
      %v1226 = vshrl.u32 %v1225, 7
      %v1227 = vsub.s32 2, %v1226
      %v1228 = vrot.slane %v677, %v1227
      %v1229 = vmul.f32 %v1228, 0.0
      %v1230 = vmul.f32 %v848, %v1228
      %v1231 = vmul.f32 %v849, %v1228
      %v1232 = vmul.f32 %v850, %v1228
      %v1233 = vmul.f32 %v851, %v1228
      %v1234 = vmul.f32 %v852, %v1228
      %v1235 = vmul.f32 %v853, %v1228
      %v1236 = vmul.f32 %v854, %v1228
      %v1237 = vmul.f32 %v855, %v1228
      %v1238 = vmul.f32 %v856, %v1228
      %v1239 = vmul.f32 %v857, %v1228
      %v1240 = vmul.f32 %v858, %v1228
      %v1241 = vmul.f32 %v859, %v1228
      %v1242 = vmul.f32 %v860, %v1228
      %v1243 = vmul.f32 %v861, %v1228
      %v1244 = vmul.f32 %v862, %v1228
      %v1245 = vmul.f32 %v863, %v1228
      %v1246 = vmul.f32 %v864, %v1228
      %v1247 = vmul.f32 %v865, %v1228
      %v1248 = vmul.f32 %v866, %v1228
      %v1249 = vmul.f32 %v867, %v1228
      %v1250 = vmul.f32 %v868, %v1228
      %v1251 = vmul.f32 %v869, %v1228
      %v1252 = vmul.f32 %v870, %v1228
      %v1253 = vmul.f32 %v871, %v1228
      %v1254 = vmul.f32 %v872, %v1228
      %v1255 = vmul.f32 %v873, %v1228
      %v1256 = vmul.f32 %v874, %v1228
      %v1257 = vmul.f32 %v875, %v1228
      %v1258 = vmul.f32 %v876, %v1228
      %v1259 = vmul.f32 %v877, %v1228
      %v1260 = vadd.f32 %v1193, %v1229
      %v1261 = vadd.f32 %v1194, %v1229
      %v1262 = vadd.f32 %v1195, %v1230
      %v1263 = vadd.f32 %v1196, %v1231
      %v1264 = vadd.f32 %v1197, %v1232
      %v1265 = vadd.f32 %v1198, %v1233
      %v1266 = vadd.f32 %v1199, %v1234
      %v1267 = vadd.f32 %v1200, %v1235
      %v1268 = vadd.f32 %v1201, %v1236
      %v1269 = vadd.f32 %v1202, %v1237
      %v1270 = vadd.f32 %v1203, %v1238
      %v1271 = vadd.f32 %v1204, %v1239
      %v1272 = vadd.f32 %v1205, %v1240
      %v1273 = vadd.f32 %v1206, %v1241
      %v1274 = vadd.f32 %v1207, %v1242
      %v1275 = vadd.f32 %v1208, %v1243
      %v1276 = vadd.f32 %v1209, %v1244
      %v1277 = vadd.f32 %v1210, %v1245
      %v1278 = vadd.f32 %v1211, %v1246
      %v1279 = vadd.f32 %v1212, %v1247
      %v1280 = vadd.f32 %v1213, %v1248
      %v1281 = vadd.f32 %v1214, %v1249
      %v1282 = vadd.f32 %v1215, %v1250
      %v1283 = vadd.f32 %v1216, %v1251
      %v1284 = vadd.f32 %v1217, %v1252
      %v1285 = vadd.f32 %v1218, %v1253
      %v1286 = vadd.f32 %v1219, %v1254
      %v1287 = vadd.f32 %v1220, %v1255
      %v1288 = vadd.f32 %v1221, %v1256
      %v1289 = vadd.f32 %v1222, %v1257
      %v1290 = vadd.f32 %v1223, %v1258
      %v1291 = vadd.f32 %v1224, %v1259
      %v1292 = vlaneseq
      %v1293 = vshrl.u32 %v1292, 7
      %v1294 = vsub.s32 7, %v1293
      %v1295 = vrot.slane %v677, %v1294
      %v1296 = vmul.f32 %v647, %v1295
      %v1297 = vmul.f32 %v648, %v1295
      %v1298 = vmul.f32 %v649, %v1295
      %v1299 = vmul.f32 %v650, %v1295
      %v1300 = vmul.f32 %v651, %v1295
      %v1301 = vmul.f32 %v652, %v1295
      %v1302 = vmul.f32 %v653, %v1295
      %v1303 = vmul.f32 %v654, %v1295
      %v1304 = vmul.f32 %v655, %v1295
      %v1305 = vmul.f32 %v656, %v1295
      %v1306 = vmul.f32 %v657, %v1295
      %v1307 = vmul.f32 %v658, %v1295
      %v1308 = vmul.f32 %v659, %v1295
      %v1309 = vmul.f32 %v660, %v1295
      %v1310 = vmul.f32 %v661, %v1295
      %v1311 = vmul.f32 %v662, %v1295
      %v1312 = vmul.f32 %v663, %v1295
      %v1313 = vmul.f32 %v664, %v1295
      %v1314 = vmul.f32 %v665, %v1295
      %v1315 = vmul.f32 %v666, %v1295
      %v1316 = vmul.f32 %v667, %v1295
      %v1317 = vmul.f32 %v668, %v1295
      %v1318 = vmul.f32 %v669, %v1295
      %v1319 = vmul.f32 %v670, %v1295
      %v1320 = vmul.f32 %v671, %v1295
      %v1321 = vmul.f32 %v672, %v1295
      %v1322 = vmul.f32 %v673, %v1295
      %v1323 = vmul.f32 %v674, %v1295
      %v1324 = vmul.f32 %v675, %v1295
      %v1325 = vmul.f32 %v676, %v1295
      %v1326 = vmul.f32 %v1295, 0.0
      %v1327 = vadd.f32 %v1260, %v1296
      %v1328 = vadd.f32 %v1261, %v1297
      %v1329 = vadd.f32 %v1262, %v1298
      %v1330 = vadd.f32 %v1263, %v1299
      %v1331 = vadd.f32 %v1264, %v1300
      %v1332 = vadd.f32 %v1265, %v1301
      %v1333 = vadd.f32 %v1266, %v1302
      %v1334 = vadd.f32 %v1267, %v1303
      %v1335 = vadd.f32 %v1268, %v1304
      %v1336 = vadd.f32 %v1269, %v1305
      %v1337 = vadd.f32 %v1270, %v1306
      %v1338 = vadd.f32 %v1271, %v1307
      %v1339 = vadd.f32 %v1272, %v1308
      %v1340 = vadd.f32 %v1273, %v1309
      %v1341 = vadd.f32 %v1274, %v1310
      %v1342 = vadd.f32 %v1275, %v1311
      %v1343 = vadd.f32 %v1276, %v1312
      %v1344 = vadd.f32 %v1277, %v1313
      %v1345 = vadd.f32 %v1278, %v1314
      %v1346 = vadd.f32 %v1279, %v1315
      %v1347 = vadd.f32 %v1280, %v1316
      %v1348 = vadd.f32 %v1281, %v1317
      %v1349 = vadd.f32 %v1282, %v1318
      %v1350 = vadd.f32 %v1283, %v1319
      %v1351 = vadd.f32 %v1284, %v1320
      %v1352 = vadd.f32 %v1285, %v1321
      %v1353 = vadd.f32 %v1286, %v1322
      %v1354 = vadd.f32 %v1287, %v1323
      %v1355 = vadd.f32 %v1288, %v1324
      %v1356 = vadd.f32 %v1289, %v1325
      %v1357 = vadd.f32 %v1290, %v1326
      %v1358 = vadd.f32 %v1291, %v1326
      %v1359 = vlaneseq
      %v1360 = vshrl.u32 %v1359, 7
      %v1361 = vsub.s32 6, %v1360
      %v1362 = vrot.slane %v677, %v1361
      %v1363 = vmul.f32 %v751, %v1362
      %v1364 = vmul.f32 %v752, %v1362
      %v1365 = vmul.f32 %v753, %v1362
      %v1366 = vmul.f32 %v754, %v1362
      %v1367 = vmul.f32 %v755, %v1362
      %v1368 = vmul.f32 %v756, %v1362
      %v1369 = vmul.f32 %v757, %v1362
      %v1370 = vmul.f32 %v758, %v1362
      %v1371 = vmul.f32 %v759, %v1362
      %v1372 = vmul.f32 %v760, %v1362
      %v1373 = vmul.f32 %v761, %v1362
      %v1374 = vmul.f32 %v762, %v1362
      %v1375 = vmul.f32 %v763, %v1362
      %v1376 = vmul.f32 %v764, %v1362
      %v1377 = vmul.f32 %v765, %v1362
      %v1378 = vmul.f32 %v766, %v1362
      %v1379 = vmul.f32 %v767, %v1362
      %v1380 = vmul.f32 %v768, %v1362
      %v1381 = vmul.f32 %v769, %v1362
      %v1382 = vmul.f32 %v770, %v1362
      %v1383 = vmul.f32 %v771, %v1362
      %v1384 = vmul.f32 %v772, %v1362
      %v1385 = vmul.f32 %v773, %v1362
      %v1386 = vmul.f32 %v774, %v1362
      %v1387 = vmul.f32 %v775, %v1362
      %v1388 = vmul.f32 %v776, %v1362
      %v1389 = vmul.f32 %v777, %v1362
      %v1390 = vmul.f32 %v778, %v1362
      %v1391 = vmul.f32 %v779, %v1362
      %v1392 = vmul.f32 %v780, %v1362
      %v1393 = vmul.f32 %v1362, 0.0
      %v1394 = vadd.f32 %v1327, %v1363
      %v1395 = vadd.f32 %v1328, %v1364
      %v1396 = vadd.f32 %v1329, %v1365
      %v1397 = vadd.f32 %v1330, %v1366
      %v1398 = vadd.f32 %v1331, %v1367
      %v1399 = vadd.f32 %v1332, %v1368
      %v1400 = vadd.f32 %v1333, %v1369
      %v1401 = vadd.f32 %v1334, %v1370
      %v1402 = vadd.f32 %v1335, %v1371
      %v1403 = vadd.f32 %v1336, %v1372
      %v1404 = vadd.f32 %v1337, %v1373
      %v1405 = vadd.f32 %v1338, %v1374
      %v1406 = vadd.f32 %v1339, %v1375
      %v1407 = vadd.f32 %v1340, %v1376
      %v1408 = vadd.f32 %v1341, %v1377
      %v1409 = vadd.f32 %v1342, %v1378
      %v1410 = vadd.f32 %v1343, %v1379
      %v1411 = vadd.f32 %v1344, %v1380
      %v1412 = vadd.f32 %v1345, %v1381
      %v1413 = vadd.f32 %v1346, %v1382
      %v1414 = vadd.f32 %v1347, %v1383
      %v1415 = vadd.f32 %v1348, %v1384
      %v1416 = vadd.f32 %v1349, %v1385
      %v1417 = vadd.f32 %v1350, %v1386
      %v1418 = vadd.f32 %v1351, %v1387
      %v1419 = vadd.f32 %v1352, %v1388
      %v1420 = vadd.f32 %v1353, %v1389
      %v1421 = vadd.f32 %v1354, %v1390
      %v1422 = vadd.f32 %v1355, %v1391
      %v1423 = vadd.f32 %v1356, %v1392
      %v1424 = vadd.f32 %v1357, %v1393
      %v1425 = vadd.f32 %v1358, %v1393
      %v1426 = vlaneseq
      %v1427 = vshrl.u32 %v1426, 7
      %v1428 = vsub.s32 0, %v1427
      %v1429 = vrot.slane %v678, %v1428
      %v1430 = vmul.f32 %v850, %v1429
      %v1431 = vmul.f32 %v851, %v1429
      %v1432 = vmul.f32 %v852, %v1429
      %v1433 = vmul.f32 %v853, %v1429
      %v1434 = vmul.f32 %v854, %v1429
      %v1435 = vmul.f32 %v855, %v1429
      %v1436 = vmul.f32 %v856, %v1429
      %v1437 = vmul.f32 %v857, %v1429
      %v1438 = vmul.f32 %v858, %v1429
      %v1439 = vmul.f32 %v859, %v1429
      %v1440 = vmul.f32 %v860, %v1429
      %v1441 = vmul.f32 %v861, %v1429
      %v1442 = vmul.f32 %v862, %v1429
      %v1443 = vmul.f32 %v863, %v1429
      %v1444 = vmul.f32 %v864, %v1429
      %v1445 = vmul.f32 %v865, %v1429
      %v1446 = vmul.f32 %v866, %v1429
      %v1447 = vmul.f32 %v867, %v1429
      %v1448 = vmul.f32 %v868, %v1429
      %v1449 = vmul.f32 %v869, %v1429
      %v1450 = vmul.f32 %v870, %v1429
      %v1451 = vmul.f32 %v871, %v1429
      %v1452 = vmul.f32 %v872, %v1429
      %v1453 = vmul.f32 %v873, %v1429
      %v1454 = vmul.f32 %v874, %v1429
      %v1455 = vmul.f32 %v875, %v1429
      %v1456 = vmul.f32 %v876, %v1429
      %v1457 = vmul.f32 %v877, %v1429
      %v1458 = vmul.f32 %v878, %v1429
      %v1459 = vmul.f32 %v879, %v1429
      %v1460 = vmul.f32 %v1429, 0.0
      %v1461 = vadd.f32 %v1394, %v1430
      %v1462 = vadd.f32 %v1395, %v1431
      %v1463 = vadd.f32 %v1396, %v1432
      %v1464 = vadd.f32 %v1397, %v1433
      %v1465 = vadd.f32 %v1398, %v1434
      %v1466 = vadd.f32 %v1399, %v1435
      %v1467 = vadd.f32 %v1400, %v1436
      %v1468 = vadd.f32 %v1401, %v1437
      %v1469 = vadd.f32 %v1402, %v1438
      %v1470 = vadd.f32 %v1403, %v1439
      %v1471 = vadd.f32 %v1404, %v1440
      %v1472 = vadd.f32 %v1405, %v1441
      %v1473 = vadd.f32 %v1406, %v1442
      %v1474 = vadd.f32 %v1407, %v1443
      %v1475 = vadd.f32 %v1408, %v1444
      %v1476 = vadd.f32 %v1409, %v1445
      %v1477 = vadd.f32 %v1410, %v1446
      %v1478 = vadd.f32 %v1411, %v1447
      %v1479 = vadd.f32 %v1412, %v1448
      %v1480 = vadd.f32 %v1413, %v1449
      %v1481 = vadd.f32 %v1414, %v1450
      %v1482 = vadd.f32 %v1415, %v1451
      %v1483 = vadd.f32 %v1416, %v1452
      %v1484 = vadd.f32 %v1417, %v1453
      %v1485 = vadd.f32 %v1418, %v1454
      %v1486 = vadd.f32 %v1419, %v1455
      %v1487 = vadd.f32 %v1420, %v1456
      %v1488 = vadd.f32 %v1421, %v1457
      %v1489 = vadd.f32 %v1422, %v1458
      %v1490 = vadd.f32 %v1423, %v1459
      %v1491 = vadd.f32 %v1424, %v1460
      %v1492 = vadd.f32 %v1425, %v1460
      %v1493 = vmax.f32 %v1461, 0.0
      %v1494 = vmax.f32 %v1462, 0.0
      %v1495 = vmax.f32 %v1463, 0.0
      %v1496 = vmax.f32 %v1464, 0.0
      %v1497 = vmax.f32 %v1465, 0.0
      %v1498 = vmax.f32 %v1466, 0.0
      %v1499 = vmax.f32 %v1467, 0.0
      %v1500 = vmax.f32 %v1468, 0.0
      %v1501 = vmax.f32 %v1469, 0.0
      %v1502 = vmax.f32 %v1470, 0.0
      %v1503 = vmax.f32 %v1471, 0.0
      %v1504 = vmax.f32 %v1472, 0.0
      %v1505 = vmax.f32 %v1473, 0.0
      %v1506 = vmax.f32 %v1474, 0.0
      %v1507 = vmax.f32 %v1475, 0.0
      %v1508 = vmax.f32 %v1476, 0.0
      %v1509 = vmax.f32 %v1477, 0.0
      %v1510 = vmax.f32 %v1478, 0.0
      %v1511 = vmax.f32 %v1479, 0.0
      %v1512 = vmax.f32 %v1480, 0.0
      %v1513 = vmax.f32 %v1481, 0.0
      %v1514 = vmax.f32 %v1482, 0.0
      %v1515 = vmax.f32 %v1483, 0.0
      %v1516 = vmax.f32 %v1484, 0.0
      %v1517 = vmax.f32 %v1485, 0.0
      %v1518 = vmax.f32 %v1486, 0.0
      %v1519 = vmax.f32 %v1487, 0.0
      %v1520 = vmax.f32 %v1488, 0.0
      %v1521 = vmax.f32 %v1489, 0.0
      %v1522 = vmax.f32 %v1490, 0.0
      %v1523 = vmax.f32 %v1491, 0.0
      %v1524 = vmax.f32 %v1492, 0.0
      %v1525 = vld [vmem:[%s5] sm:$0xff]
      %v1526 = vld [vmem:[%s5 + $0x8] sm:$0xff]
      %v1527 = vld [vmem:[%s6] sm:$0x1]
      %v1529 = vlaneseq
      %v1530 = vshrl.u32 %v1529, 7
      %v1531 = vsub.s32 0, %v1530
      %v1532 = vrot.slane %v1527, %v1531
      %vm1534 = vcmask 130048
      %v1536 = vsel %vm1534, %v1493, 0
      %v1539 = vsel %vm1534, %v1494, 0
      %v1542 = vsel %vm1534, %v1495, 0
      %v1545 = vsel %vm1534, %v1496, 0
      %v1548 = vsel %vm1534, %v1497, 0
      %v1551 = vsel %vm1534, %v1498, 0
      %v1554 = vsel %vm1534, %v1499, 0
      %v1557 = vsel %vm1534, %v1500, 0
      %v1560 = vsel %vm1534, %v1501, 0
      %v1563 = vsel %vm1534, %v1502, 0
      %v1566 = vsel %vm1534, %v1503, 0
      %v1569 = vsel %vm1534, %v1504, 0
      %v1572 = vsel %vm1534, %v1505, 0
      %v1575 = vsel %vm1534, %v1506, 0
      %v1578 = vsel %vm1534, %v1507, 0
      %v1581 = vsel %vm1534, %v1508, 0
      %v1584 = vsel %vm1534, %v1509, 0
      %v1587 = vsel %vm1534, %v1510, 0
      %v1590 = vsel %vm1534, %v1511, 0
      %v1593 = vsel %vm1534, %v1512, 0
      %v1596 = vsel %vm1534, %v1513, 0
      %v1599 = vsel %vm1534, %v1514, 0
      %v1602 = vsel %vm1534, %v1515, 0
      %v1605 = vsel %vm1534, %v1516, 0
      %v1608 = vsel %vm1534, %v1517, 0
      %v1611 = vsel %vm1534, %v1518, 0
      %v1614 = vsel %vm1534, %v1519, 0
      %v1617 = vsel %vm1534, %v1520, 0
      %v1620 = vsel %vm1534, %v1521, 0
      %v1623 = vsel %vm1534, %v1522, 0
      %v1626 = vsel %vm1534, %v1523, 0
      %v1629 = vsel %vm1534, %v1524, 0
      %1631 = vmatprep.subr.mxu0 0.0
      %1632 = vmatpush1.msra.mxu0 %v1525
      %1633 = vmatprep.subr.mxu0 0.0
      %1634 = vmatpush1.msra.mxu0 %v1526
      %1635 = vmatprep.subr.mxu0 0.0
      %1636 = vmatpush1.msra.mxu0 0.0
      %1637 = vmatprep.subr.mxu0 0.0
      %1638 = vmatpush1.msra.mxu0 0.0
      %1639 = vmatprep.subr.mxu0 0.0
      %1640 = vmatpush1.msra.mxu0 0.0
      %1641 = vmatprep.subr.mxu0 0.0
      %1642 = vmatpush1.msra.mxu0 0.0
      %1643 = vmatprep.subr.mxu0 0.0
      %1644 = vmatpush1.msra.mxu0 0.0
      %1645 = vmatprep.subr.mxu0 0.0
      %1646 = vmatpush1.msra.mxu0 0.0
      %1647 = vmatprep.subr.mxu0 0.0
      %1648 = vmatpush1.msra.mxu0 0.0
      %1649 = vmatprep.subr.mxu0 0.0
      %1650 = vmatpush1.msra.mxu0 0.0
      %1651 = vmatprep.subr.mxu0 0.0
      %1652 = vmatpush1.msra.mxu0 0.0
      %1653 = vmatprep.subr.mxu0 0.0
      %1654 = vmatpush1.msra.mxu0 0.0
      %1655 = vmatprep.subr.mxu0 0.0
      %1656 = vmatpush1.msra.mxu0 0.0
      %1657 = vmatprep.subr.mxu0 0.0
      %1658 = vmatpush1.msra.mxu0 0.0
      %1659 = vmatprep.subr.mxu0 0.0
      %1660 = vmatpush1.msra.mxu0 0.0
      %1661 = vmatprep.subr.mxu0 0.0
      %1662 = vmatpush1.msra.mxu0 0.0
      %1663 = vmatprep.subr.mxu0 0.0
      %1664 = vmatpush1.msra.mxu0 0.0
      %1665 = vmatprep.subr.mxu0 0.0
      %1666 = vmatpush1.msra.mxu0 0.0
      %1667 = vmatprep.subr.mxu0 0.0
      %1668 = vmatpush1.msra.mxu0 0.0
      %1669 = vmatprep.subr.mxu0 0.0
      %1670 = vmatpush1.msra.mxu0 0.0
      %1671 = vmatprep.subr.mxu0 0.0
      %1672 = vmatpush1.msra.mxu0 0.0
      %1673 = vmatprep.subr.mxu0 0.0
      %1674 = vmatpush1.msra.mxu0 0.0
      %1675 = vmatprep.subr.mxu0 0.0
      %1676 = vmatpush1.msra.mxu0 0.0
      %1677 = vmatprep.subr.mxu0 0.0
      %1678 = vmatpush1.msra.mxu0 0.0
      %1679 = vmatprep.subr.mxu0 0.0
      %1680 = vmatpush1.msra.mxu0 0.0
      %1681 = vmatprep.subr.mxu0 0.0
      %1682 = vmatpush1.msra.mxu0 0.0
      %1683 = vmatprep.subr.mxu0 0.0
      %1684 = vmatpush1.msra.mxu0 0.0
      %1685 = vmatprep.subr.mxu0 0.0
      %1686 = vmatpush1.msra.mxu0 0.0
      %1687 = vmatprep.subr.mxu0 0.0
      %1688 = vmatpush1.msra.mxu0 0.0
      %1689 = vmatprep.subr.mxu0 0.0
      %1690 = vmatpush1.msra.mxu0 0.0
      %1691 = vmatprep.subr.mxu0 0.0
      %1692 = vmatpush1.msra.mxu0 0.0
      %1693 = vmatprep.subr.mxu0 0.0
      %1694 = vmatpush1.msra.mxu0 0.0
      %1695 = vmatprep.mubr.f32.mxu0 0.0
      %1696 = vmatmul.mubr.f32.gmra.mrb[0].mxu0 %v1536
      %v1697 = vpop.f32.mrb[0].mxu0
      %v1698 = vadd.f32 %v1532, %v1697
      %v1699 = vpop.f32.mrb[0].mxu0
      %1700 = vmatprep.mubr.f32.mxu0 0.0
      %1701 = vmatmul.mubr.f32.gmra.mrb[0].mxu0 %v1539
      %v1702 = vpop.f32.mrb[0].mxu0
      %v1703 = vadd.f32 %v1532, %v1702
      %v1704 = vpop.f32.mrb[0].mxu0
      %1705 = vmatprep.mubr.f32.mxu0 0.0
      %1706 = vmatmul.mubr.f32.gmra.mrb[0].mxu0 %v1542
      %v1707 = vpop.f32.mrb[0].mxu0
      %v1708 = vadd.f32 %v1532, %v1707
      %v1709 = vpop.f32.mrb[0].mxu0
      %1710 = vmatprep.mubr.f32.mxu0 0.0
      %1711 = vmatmul.mubr.f32.gmra.mrb[0].mxu0 %v1545
      %v1712 = vpop.f32.mrb[0].mxu0
      %v1713 = vadd.f32 %v1532, %v1712
      %v1714 = vpop.f32.mrb[0].mxu0
      %1715 = vmatprep.mubr.f32.mxu0 0.0
      %1716 = vmatmul.mubr.f32.gmra.mrb[0].mxu0 %v1548
      %v1717 = vpop.f32.mrb[0].mxu0
      %v1718 = vadd.f32 %v1532, %v1717
      %v1719 = vpop.f32.mrb[0].mxu0
      %1720 = vmatprep.mubr.f32.mxu0 0.0
      %1721 = vmatmul.mubr.f32.gmra.mrb[0].mxu0 %v1551
      %v1722 = vpop.f32.mrb[0].mxu0
      %v1723 = vadd.f32 %v1532, %v1722
      %v1724 = vpop.f32.mrb[0].mxu0
      %1725 = vmatprep.mubr.f32.mxu0 0.0
      %1726 = vmatmul.mubr.f32.gmra.mrb[0].mxu0 %v1554
      %v1727 = vpop.f32.mrb[0].mxu0
      %v1728 = vadd.f32 %v1532, %v1727
      %v1729 = vpop.f32.mrb[0].mxu0
      %1730 = vmatprep.mubr.f32.mxu0 0.0
      %1731 = vmatmul.mubr.f32.gmra.mrb[0].mxu0 %v1557
      %v1732 = vpop.f32.mrb[0].mxu0
      %v1733 = vadd.f32 %v1532, %v1732
      %v1734 = vpop.f32.mrb[0].mxu0
      %1735 = vmatprep.mubr.f32.mxu0 0.0
      %1736 = vmatmul.mubr.f32.gmra.mrb[0].mxu0 %v1560
      %v1737 = vpop.f32.mrb[0].mxu0
      %v1738 = vadd.f32 %v1532, %v1737
      %v1739 = vpop.f32.mrb[0].mxu0
      %1740 = vmatprep.mubr.f32.mxu0 0.0
      %1741 = vmatmul.mubr.f32.gmra.mrb[0].mxu0 %v1563
      %v1742 = vpop.f32.mrb[0].mxu0
      %v1743 = vadd.f32 %v1532, %v1742
      %v1744 = vpop.f32.mrb[0].mxu0
      %1745 = vmatprep.mubr.f32.mxu0 0.0
      %1746 = vmatmul.mubr.f32.gmra.mrb[0].mxu0 %v1566
      %v1747 = vpop.f32.mrb[0].mxu0
      %v1748 = vadd.f32 %v1532, %v1747
      %v1749 = vpop.f32.mrb[0].mxu0
      %1750 = vmatprep.mubr.f32.mxu0 0.0
      %1751 = vmatmul.mubr.f32.gmra.mrb[0].mxu0 %v1569
      %v1752 = vpop.f32.mrb[0].mxu0
      %v1753 = vadd.f32 %v1532, %v1752
      %v1754 = vpop.f32.mrb[0].mxu0
      %1755 = vmatprep.mubr.f32.mxu0 0.0
      %1756 = vmatmul.mubr.f32.gmra.mrb[0].mxu0 %v1572
      %v1757 = vpop.f32.mrb[0].mxu0
      %v1758 = vadd.f32 %v1532, %v1757
      %v1759 = vpop.f32.mrb[0].mxu0
      %1760 = vmatprep.mubr.f32.mxu0 0.0
      %1761 = vmatmul.mubr.f32.gmra.mrb[0].mxu0 %v1575
      %v1762 = vpop.f32.mrb[0].mxu0
      %v1763 = vadd.f32 %v1532, %v1762
      %v1764 = vpop.f32.mrb[0].mxu0
      %1765 = vmatprep.mubr.f32.mxu0 0.0
      %1766 = vmatmul.mubr.f32.gmra.mrb[0].mxu0 %v1578
      %v1767 = vpop.f32.mrb[0].mxu0
      %v1768 = vadd.f32 %v1532, %v1767
      %v1769 = vpop.f32.mrb[0].mxu0
      %1770 = vmatprep.mubr.f32.mxu0 0.0
      %1771 = vmatmul.mubr.f32.gmra.mrb[0].mxu0 %v1581
      %v1772 = vpop.f32.mrb[0].mxu0
      %v1773 = vadd.f32 %v1532, %v1772
      %v1774 = vpop.f32.mrb[0].mxu0
      %1775 = vmatprep.mubr.f32.mxu0 0.0
      %1776 = vmatmul.mubr.f32.gmra.mrb[0].mxu0 %v1584
      %v1777 = vpop.f32.mrb[0].mxu0
      %v1778 = vadd.f32 %v1532, %v1777
      %v1779 = vpop.f32.mrb[0].mxu0
      %1780 = vmatprep.mubr.f32.mxu0 0.0
      %1781 = vmatmul.mubr.f32.gmra.mrb[0].mxu0 %v1587
      %v1782 = vpop.f32.mrb[0].mxu0
      %v1783 = vadd.f32 %v1532, %v1782
      %v1784 = vpop.f32.mrb[0].mxu0
      %1785 = vmatprep.mubr.f32.mxu0 0.0
      %1786 = vmatmul.mubr.f32.gmra.mrb[0].mxu0 %v1590
      %v1787 = vpop.f32.mrb[0].mxu0
      %v1788 = vadd.f32 %v1532, %v1787
      %v1789 = vpop.f32.mrb[0].mxu0
      %1790 = vmatprep.mubr.f32.mxu0 0.0
      %1791 = vmatmul.mubr.f32.gmra.mrb[0].mxu0 %v1593
      %v1792 = vpop.f32.mrb[0].mxu0
      %v1793 = vadd.f32 %v1532, %v1792
      %v1794 = vpop.f32.mrb[0].mxu0
      %1795 = vmatprep.mubr.f32.mxu0 0.0
      %1796 = vmatmul.mubr.f32.gmra.mrb[0].mxu0 %v1596
      %v1797 = vpop.f32.mrb[0].mxu0
      %v1798 = vadd.f32 %v1532, %v1797
      %v1799 = vpop.f32.mrb[0].mxu0
      %1800 = vmatprep.mubr.f32.mxu0 0.0
      %1801 = vmatmul.mubr.f32.gmra.mrb[0].mxu0 %v1599
      %v1802 = vpop.f32.mrb[0].mxu0
      %v1803 = vadd.f32 %v1532, %v1802
      %v1804 = vpop.f32.mrb[0].mxu0
      %1805 = vmatprep.mubr.f32.mxu0 0.0
      %1806 = vmatmul.mubr.f32.gmra.mrb[0].mxu0 %v1602
      %v1807 = vpop.f32.mrb[0].mxu0
      %v1808 = vadd.f32 %v1532, %v1807
      %v1809 = vpop.f32.mrb[0].mxu0
      %1810 = vmatprep.mubr.f32.mxu0 0.0
      %1811 = vmatmul.mubr.f32.gmra.mrb[0].mxu0 %v1605
      %v1812 = vpop.f32.mrb[0].mxu0
      %v1813 = vadd.f32 %v1532, %v1812
      %v1814 = vpop.f32.mrb[0].mxu0
      %1815 = vmatprep.mubr.f32.mxu0 0.0
      %1816 = vmatmul.mubr.f32.gmra.mrb[0].mxu0 %v1608
      %v1817 = vpop.f32.mrb[0].mxu0
      %v1818 = vadd.f32 %v1532, %v1817
      %v1819 = vpop.f32.mrb[0].mxu0
      %1820 = vmatprep.mubr.f32.mxu0 0.0
      %1821 = vmatmul.mubr.f32.gmra.mrb[0].mxu0 %v1611
      %v1822 = vpop.f32.mrb[0].mxu0
      %v1823 = vadd.f32 %v1532, %v1822
      %v1824 = vpop.f32.mrb[0].mxu0
      %1825 = vmatprep.mubr.f32.mxu0 0.0
      %1826 = vmatmul.mubr.f32.gmra.mrb[0].mxu0 %v1614
      %v1827 = vpop.f32.mrb[0].mxu0
      %v1828 = vadd.f32 %v1532, %v1827
      %v1829 = vpop.f32.mrb[0].mxu0
      %1830 = vmatprep.mubr.f32.mxu0 0.0
      %1831 = vmatmul.mubr.f32.gmra.mrb[0].mxu0 %v1617
      %v1832 = vpop.f32.mrb[0].mxu0
      %v1833 = vadd.f32 %v1532, %v1832
      %v1834 = vpop.f32.mrb[0].mxu0
      %1835 = vmatprep.mubr.f32.mxu0 0.0
      %1836 = vmatmul.mubr.f32.gmra.mrb[0].mxu0 %v1620
      %v1837 = vpop.f32.mrb[0].mxu0
      %v1838 = vadd.f32 %v1532, %v1837
      %v1839 = vpop.f32.mrb[0].mxu0
      %1840 = vmatprep.mubr.f32.mxu0 0.0
      %1841 = vmatmul.mubr.f32.gmra.mrb[0].mxu0 %v1623
      %v1842 = vpop.f32.mrb[0].mxu0
      %v1843 = vadd.f32 %v1532, %v1842
      %v1844 = vpop.f32.mrb[0].mxu0
      %1845 = vmatprep.mubr.f32.mxu0 0.0
      %1846 = vmatmul.mubr.f32.gmra.mrb[0].mxu0 %v1626
      %v1847 = vpop.f32.mrb[0].mxu0
      %v1848 = vadd.f32 %v1532, %v1847
      %v1849 = vpop.f32.mrb[0].mxu0
      %1850 = vmatprep.mubr.f32.mxu0 0.0
      %1851 = vmatmul.mubr.f32.gmra.mrb[0].mxu0 %v1629
      %v1852 = vpop.f32.mrb[0].mxu0
      %v1853 = vadd.f32 %v1532, %v1852
      %v1854 = vpop.f32.mrb[0].mxu0
      %1855 = vdwg.mxu0
      %v1856 = vadd.f32 %v1698, %v279
      %v1857 = vadd.f32 %v1703, %v280
      %v1858 = vadd.f32 %v1708, %v281
      %v1859 = vadd.f32 %v1713, %v282
      %v1860 = vadd.f32 %v1718, %v283
      %v1861 = vadd.f32 %v1723, %v284
      %v1862 = vadd.f32 %v1728, %v285
      %v1863 = vadd.f32 %v1733, %v286
      %v1864 = vadd.f32 %v1738, %v287
      %v1865 = vadd.f32 %v1743, %v288
      %v1866 = vadd.f32 %v1748, %v289
      %v1867 = vadd.f32 %v1753, %v290
      %v1868 = vadd.f32 %v1758, %v291
      %v1869 = vadd.f32 %v1763, %v292
      %v1870 = vadd.f32 %v1768, %v293
      %v1871 = vadd.f32 %v1773, %v294
      %v1872 = vadd.f32 %v1778, %v295
      %v1873 = vadd.f32 %v1783, %v296
      %v1874 = vadd.f32 %v1788, %v297
      %v1875 = vadd.f32 %v1793, %v298
      %v1876 = vadd.f32 %v1798, %v299
      %v1877 = vadd.f32 %v1803, %v300
      %v1878 = vadd.f32 %v1808, %v301
      %v1879 = vadd.f32 %v1813, %v302
      %v1880 = vadd.f32 %v1818, %v303
      %v1881 = vadd.f32 %v1823, %v304
      %v1882 = vadd.f32 %v1828, %v305
      %v1883 = vadd.f32 %v1833, %v306
      %v1884 = vadd.f32 %v1838, %v307
      %v1885 = vadd.f32 %v1843, %v308
      %v1886 = vadd.f32 %v1848, %v309
      %v1887 = vadd.f32 %v1853, %v310
      %1888 = vst.msk [vmem:[%s278] sm:$0xff] %vm319, %v1856
      %1889 = vst.msk [vmem:[%s278 + $0x8] sm:$0xff] %vm319, %v1857
      %1890 = vst.msk [vmem:[%s278 + $0x10] sm:$0xff] %vm319, %v1858
      %1891 = vst.msk [vmem:[%s278 + $0x18] sm:$0xff] %vm319, %v1859
      %1892 = vst.msk [vmem:[%s278 + $0x20] sm:$0xff] %vm319, %v1860
      %1893 = vst.msk [vmem:[%s278 + $0x28] sm:$0xff] %vm319, %v1861
      %1894 = vst.msk [vmem:[%s278 + $0x30] sm:$0xff] %vm319, %v1862
      %1895 = vst.msk [vmem:[%s278 + $0x38] sm:$0xff] %vm319, %v1863
      %1896 = vst.msk [vmem:[%s278 + $0x40] sm:$0xff] %vm319, %v1864
      %1897 = vst.msk [vmem:[%s278 + $0x48] sm:$0xff] %vm319, %v1865
      %1898 = vst.msk [vmem:[%s278 + $0x50] sm:$0xff] %vm319, %v1866
      %1899 = vst.msk [vmem:[%s278 + $0x58] sm:$0xff] %vm319, %v1867
      %1900 = vst.msk [vmem:[%s278 + $0x60] sm:$0xff] %vm319, %v1868
      %1901 = vst.msk [vmem:[%s278 + $0x68] sm:$0xff] %vm319, %v1869
      %1902 = vst.msk [vmem:[%s278 + $0x70] sm:$0xff] %vm319, %v1870
      %1903 = vst.msk [vmem:[%s278 + $0x78] sm:$0xff] %vm319, %v1871
      %1904 = vst.msk [vmem:[%s278 + $0x80] sm:$0xff] %vm319, %v1872
      %1905 = vst.msk [vmem:[%s278 + $0x88] sm:$0xff] %vm319, %v1873
      %1906 = vst.msk [vmem:[%s278 + $0x90] sm:$0xff] %vm319, %v1874
      %1907 = vst.msk [vmem:[%s278 + $0x98] sm:$0xff] %vm319, %v1875
      %1908 = vst.msk [vmem:[%s278 + $0xa0] sm:$0xff] %vm319, %v1876
      %1909 = vst.msk [vmem:[%s278 + $0xa8] sm:$0xff] %vm319, %v1877
      %1910 = vst.msk [vmem:[%s278 + $0xb0] sm:$0xff] %vm319, %v1878
      %1911 = vst.msk [vmem:[%s278 + $0xb8] sm:$0xff] %vm319, %v1879
      %1912 = vst.msk [vmem:[%s278 + $0xc0] sm:$0xff] %vm319, %v1880
      %1913 = vst.msk [vmem:[%s278 + $0xc8] sm:$0xff] %vm319, %v1881
      %1914 = vst.msk [vmem:[%s278 + $0xd0] sm:$0xff] %vm319, %v1882
      %1915 = vst.msk [vmem:[%s278 + $0xd8] sm:$0xff] %vm319, %v1883
      %1916 = vst.msk [vmem:[%s278 + $0xe0] sm:$0xff] %vm319, %v1884
      %1917 = vst.msk [vmem:[%s278 + $0xe8] sm:$0xff] %vm319, %v1885
      %1918 = vst.msk [vmem:[%s278 + $0xf0] sm:$0xff] %vm319, %v1886
      %1919 = vst.msk [vmem:[%s278 + $0xf8] sm:$0xff] %vm319, %v1887
      %p1920 = scmp.lt.s32.totalorder %s18, 1
      %s1921 = scalar_select %p1920, %s18, 1
      %s1922 = smul.addr %s1921, 32
      %s1923 = smul.addr %s1922, 8
      %s1924 = scalar_lea.vmem %s7, %s1923
      // Predicated region
      $region49: #{tpu_custom_call.1} parent=47 // pred_check
        %p1925 = pneg %p188
      $region50: #{tpu_custom_call.1} parent=47 // pred_check_branch
        %1927 = sbr.rel (%p1925) target = $region52
      $region51: #{tpu_custom_call.1} parent=47 // pred_region
        _
      $region52: #{tpu_custom_call.1} parent=47 // pred_fallthru
        _
    $region48: #{tpu_custom_call.1} parent=5 // pred_fallthru
      _
    %p1928 = scmp.le.s32.totalorder 2, %s13
    // Predicated region
    $region53: #{tpu_custom_call.1} parent=5 // pred_check
      %p1929 = pneg %p1928
    $region54: #{tpu_custom_call.1} parent=5 // pred_check_branch
      %1931 = sbr.rel (%p1929) target = $region56
    $region55: #{tpu_custom_call.1} parent=5 // pred_region
      %s1932 = ssub.s32 %s13, 2
      // Predicated region
      $region57: #{tpu_custom_call.1} parent=55 // pred_check
        %p1933 = pneg %p194
      $region58: #{tpu_custom_call.1} parent=55 // pred_check_branch
        %1935 = sbr.rel (%p1933) target = $region60
      $region59: #{tpu_custom_call.1} parent=55 // pred_region
        %p1936 = scmp.lt.s32.totalorder %s19, 1
        %s1937 = scalar_select %p1936, %s19, 1
        %s1938 = smul.addr %s1937, 32
        %s1939 = smul.addr %s1938, 8
        %s1940 = scalar_lea.vmem %s7, %s1939
      $region60: #{tpu_custom_call.1} parent=55 // pred_fallthru
        _
    $region56: #{tpu_custom_call.1} parent=5 // pred_fallthru
      _
  $region6: #{tpu_custom_call.1} parent=0 // loop_footer
    %s17 = sadd.s32 1, %s13
  $region7: #{tpu_custom_call.1} parent=0 // loop_footer_branch
    %12 = sbr.rel target = $region3
  $region8: #{tpu_custom_call.1} parent=0 // loop_exit
    _

</llo_original>
